<compile_context>
chip_gen: v5e
topology: v5e:2x2
jax: 0.10.0
libtpu: 0.0.40
codegen_flags: <defaults>
</compile_context>

<pallas_src>
import functools

import jax
import jax.numpy as jnp
from jax.experimental import pallas as pl
from jax.experimental.pallas import tpu as pltpu


def graph_path_kernel(prod_ref, react_ref, wp_ref, wrt_ref, out_ref, *,
                      total_batch, block_batch):
    """One grid step == one tile of TB samples.

    Writes this tile's partial sum of -log P(true reaction) (broadcast over 128 lanes)
    into its own output block, so the grid axis can be 'parallel'.
    """
    g = pl.program_id(0)

    prod = prod_ref[...]          # [TB, N, F]  bf16
    reacts = react_ref[...]       # [TB, K, Fr] bf16
    tb = prod.shape[0]

    # Graph readout: sum over nodes (accumulate in f32), then linear projection on the
    # MXU (bf16 operands, f32 accumulation), M = TB.
    p = jnp.sum(prod.astype(jnp.float32), axis=1)                               # [TB, F]
    prod_emb = jnp.dot(p.astype(prod.dtype), wp_ref[...],
                       preferred_element_type=jnp.float32)                      # [TB, H]

    # Fold W_r onto the product side:  t[b, f] = sum_h prod_emb[b, h] * W_r[f, h]
    # so  scores[b, k] = sum_f react[b, k, f] * t[b, f]
    # (identical to projecting each candidate with W_r and dotting with prod_emb,
    #  but ~K x fewer MXU flops and no [TB, K, H] intermediate).
    t = jnp.dot(prod_emb.astype(wrt_ref.dtype), wrt_ref[...],
                preferred_element_type=jnp.float32)                             # [TB, Fr]

    # Candidate scores: VPU broadcast-multiply + lane reduce over Fr (K is tiny, so this
    # beats a transposed MXU matmul + result-FIFO drain). Elementwise math kept in f32.
    scores = jnp.sum(reacts.astype(jnp.float32) * t[:, None, :], axis=-1)       # [TB, K]

    # Numerically stable log-softmax over the K candidates; true reaction is k = 0.
    m = jnp.max(scores, axis=-1, keepdims=True)                                 # [TB, 1]
    lse = m + jnp.log(jnp.sum(jnp.exp(scores - m), axis=-1, keepdims=True))     # [TB, 1]
    neg_logp_true = lse - scores[:, 0:1]                                        # [TB, 1]

    def store(per_row_loss):
        partial = jnp.sum(per_row_loss, axis=0, keepdims=True)                  # [1, 1]
        # Lane-dense store: broadcast the tile partial across 128 lanes of this block.
        out_ref[0] = jnp.broadcast_to(partial, (1, 128))

    if total_batch % block_batch == 0:
        # All tiles are full: no tail mask anywhere (static decision).
        store(neg_logp_true)
    else:
        last = pl.num_programs(0) - 1

        @pl.when(g != last)
        def _():
            store(neg_logp_true)

        @pl.when(g == last)
        def _():
            # Mask rows past the true batch size (trailing partial tile holds garbage,
            # but garbage stays within its own row's softmax and is zeroed here).
            row = jax.lax.broadcasted_iota(jnp.int32, (tb, 1), 0)
            valid = (g * tb + row) < total_batch
            store(jnp.where(valid, neg_logp_true, 0.0))


def graph_path_loss(prod_nodes, react_feats, w_p, w_r, *, tb=512):
    B, N, F = prod_nodes.shape
    _, K, Fr = react_feats.shape
    H = w_p.shape[1]

    tb = min(tb, B)
    num_blocks = pl.cdiv(B, tb)
    # VMEM budget: double-buffered bf16 inputs ~= tb * (N*F + K*Fr) * 2B * 2 bufs.
    # At tb=512 with N=16, F=K*Fr/8=128 this is ~6 MiB -- well under the 32 MiB scoped
    # default on v5e/v6e/v7x; raise vmem_limit_bytes only if tb is pushed to 1-2K
    # (v6e/v5e with their 128 MiB VMEM).

    # bf16 casts: the kernel is HBM-bandwidth-bound, so halving bytes/sample is the
    # dominant lever. Matmuls accumulate in f32; softmax math stays f32 in-kernel.
    prod_bf16 = prod_nodes.astype(jnp.bfloat16)
    react_bf16 = react_feats.astype(jnp.bfloat16)
    wp_bf16 = w_p.astype(jnp.bfloat16)
    wrt_bf16 = w_r.T.astype(jnp.bfloat16)            # [H, Fr]: W_r folded onto product

    kernel = functools.partial(graph_path_kernel, total_batch=B, block_batch=tb)

    partials = pl.pallas_call(
        kernel,
        out_shape=jax.ShapeDtypeStruct((num_blocks, 1, 128), jnp.float32),
        grid_spec=pltpu.PrefetchScalarGridSpec(
            num_scalar_prefetch=0,
            grid=(num_blocks,),
            in_specs=[
                pl.BlockSpec((tb, N, F), lambda g: (g, 0, 0)),
                pl.BlockSpec((tb, K, Fr), lambda g: (g, 0, 0)),
                pl.BlockSpec((F, H), lambda g: (0, 0)),    # constant block: not re-DMA'd
                pl.BlockSpec((H, Fr), lambda g: (0, 0)),
            ],
            out_specs=pl.BlockSpec((1, 1, 128), lambda g: (g, 0, 0)),
        ),
        compiler_params=pltpu.CompilerParams(
            # Each grid step writes its own output block -> no accumulator, no race,
            # so the axis can be parallel (both TensorCores on v7x when num_blocks >= 2).
            dimension_semantics=("parallel",),
        ),
    )(prod_bf16, react_bf16, wp_bf16, wrt_bf16)

    # Final mean over the true batch size in the JAX wrapper.
    return jnp.sum(partials[:, 0, 0]) / B


def graph_path_loss_ref(prod_nodes, react_feats, w_p, w_r):
    """Pure-JAX f32 reference of the same semantics (un-folded, un-quantized)."""
    p = jnp.sum(prod_nodes, axis=1)                       # [B, F]
    pe = p @ w_p                                          # [B, H]
    re = jnp.einsum("bkf,fh->bkh", react_feats, w_r)      # [B, K, H]
    scores = jnp.sum(pe[:, None, :] * re, axis=-1)        # [B, K]
    logp = jax.nn.log_softmax(scores, axis=-1)
    react_log_prob = logp[:, 0]
    return -jnp.mean(react_log_prob)


if __name__ == "__main__":
    # Small synthetic shapes consistent with the forward:
    #   B samples, each product graph with N nodes x F features,
    #   K = 1 true reaction + (K-1) negative reactions, each with Fr features.
    # Feature / hidden dims chosen lane-dense (128).
    N, F = 16, 128
    K, Fr = 8, 128
    H = 128
    TB = 32   # small demo tile; production default is tb=512

    key = jax.random.PRNGKey(0)
    k1, k2, k3, k4 = jax.random.split(key, 4)

    # Weight scales chosen so scores are O(1) (keeps the bf16-vs-f32 comparison tight).
    w_p = jax.random.normal(k3, (F, H), dtype=jnp.float32) * (1.0 / jnp.sqrt(F * N))
    w_r = jax.random.normal(k4, (Fr, H), dtype=jnp.float32) * (1.0 / Fr)

    # Test 1: B a multiple of TB (2 full blocks -> exercises the unmasked fast path
    # and a >=2-block parallel grid).
    # Test 2: B NOT a multiple of TB (exercises the masked trailing-tile path).
    for B in (64, 50):
        kp, kr = jax.random.split(jax.random.fold_in(key, B))
        prod_nodes = jax.random.normal(kp, (B, N, F), dtype=jnp.float32)
        react_feats = jax.random.normal(kr, (B, K, Fr), dtype=jnp.float32)

        loss = jax.block_until_ready(
            graph_path_loss(prod_nodes, react_feats, w_p, w_r, tb=TB))
        loss_ref = jax.block_until_ready(
            graph_path_loss_ref(prod_nodes, react_feats, w_p, w_r))

        assert jnp.isfinite(loss), f"loss is not finite (B={B})"
        # bf16 operand quantization in the kernel -> loosened tolerance vs f32 ref.
        assert jnp.allclose(loss, loss_ref, rtol=2e-2, atol=2e-2), (B, loss, loss_ref)

    print("KERNEL_OK")
</pallas_src>

<mosaic_0001>
module attributes {stable_mosaic.version = 11 : i64} {
  func.func @graph_path_kernel(%arg0: i32, %arg1: memref<32x16x128xbf16, #tpu.memory_space<vmem>>, %arg2: memref<32x8x128xbf16, #tpu.memory_space<vmem>>, %arg3: memref<128x128xbf16, #tpu.memory_space<vmem>>, %arg4: memref<128x128xbf16, #tpu.memory_space<vmem>>, %arg5: memref<1x1x128xf32, #tpu.memory_space<vmem>>) attributes {dimension_semantics = [#tpu.dimension_semantics<parallel>], iteration_bounds = array<i64: 2>, scalar_prefetch = 0 : i64, scratch_operands = 0 : i64, tpu.core_type = #tpu.core_type<tc>, window_params = [{transform_indices = @transform_0, window_bounds = array<i64: 32, 16, 128>}, {transform_indices = @transform_1, window_bounds = array<i64: 32, 8, 128>}, {pipeline_mode = #tpu.pipeline_mode<synchronous>, transform_indices = @transform_2, window_bounds = array<i64: 128, 128>}, {pipeline_mode = #tpu.pipeline_mode<synchronous>, transform_indices = @transform_3, window_bounds = array<i64: 128, 128>}, {transform_indices = @transform_4, window_bounds = array<i64: 1, 1, 128>}]} {
    %c0 = arith.constant 0 : index
    %c0_0 = arith.constant 0 : index
    %c0_1 = arith.constant 0 : index
    %0 = vector.load %arg1[%c0, %c0_0, %c0_1] : memref<32x16x128xbf16, #tpu.memory_space<vmem>>, vector<32x16x128xbf16>
    %c0_2 = arith.constant 0 : index
    %c0_3 = arith.constant 0 : index
    %c0_4 = arith.constant 0 : index
    %1 = vector.load %arg2[%c0_2, %c0_3, %c0_4] : memref<32x8x128xbf16, #tpu.memory_space<vmem>>, vector<32x8x128xbf16>
    %2 = arith.extf %0 : vector<32x16x128xbf16> to vector<32x16x128xf32>
    %cst = arith.constant dense<0.000000e+00> : vector<32x128xf32>
    %3 = vector.multi_reduction <add>, %2, %cst [1] : vector<32x16x128xf32> to vector<32x128xf32>
    %4 = arith.truncf %3 : vector<32x128xf32> to vector<32x128xbf16>
    %c0_5 = arith.constant 0 : index
    %c0_6 = arith.constant 0 : index
    %5 = vector.load %arg3[%c0_5, %c0_6] : memref<128x128xbf16, #tpu.memory_space<vmem>>, vector<128x128xbf16>
    %cst_7 = arith.constant dense<0.000000e+00> : vector<32x128xf32>
    %6 = tpu.matmul %4, %5, %cst_7 {dimension_numbers = #tpu.dot_dimension_numbers<[1], [0], [0], [1], [0, 0, 1, 1], [], []>} : vector<32x128xbf16>, vector<128x128xbf16>, vector<32x128xf32> -> vector<32x128xf32>
    %7 = arith.truncf %6 : vector<32x128xf32> to vector<32x128xbf16>
    %c0_8 = arith.constant 0 : index
    %c0_9 = arith.constant 0 : index
    %8 = vector.load %arg4[%c0_8, %c0_9] : memref<128x128xbf16, #tpu.memory_space<vmem>>, vector<128x128xbf16>
    %cst_10 = arith.constant dense<0.000000e+00> : vector<32x128xf32>
    %9 = tpu.matmul %7, %8, %cst_10 {dimension_numbers = #tpu.dot_dimension_numbers<[1], [0], [0], [1], [0, 0, 1, 1], [], []>} : vector<32x128xbf16>, vector<128x128xbf16>, vector<32x128xf32> -> vector<32x128xf32>
    %10 = arith.extf %1 : vector<32x8x128xbf16> to vector<32x8x128xf32>
    %11 = vector.shape_cast %9 : vector<32x128xf32> to vector<32x1x128xf32>
    %12 = vector.broadcast %11 : vector<32x1x128xf32> to vector<32x8x128xf32>
    %13 = arith.mulf %10, %12 : vector<32x8x128xf32>
    %cst_11 = arith.constant dense<0.000000e+00> : vector<32x8xf32>
    %14 = vector.multi_reduction <add>, %13, %cst_11 [2] : vector<32x8x128xf32> to vector<32x8xf32>
    %cst_12 = arith.constant dense<0xFF800000> : vector<32xf32>
    %15 = vector.multi_reduction <maximumf>, %14, %cst_12 [1] : vector<32x8xf32> to vector<32xf32>
    %16 = vector.shape_cast %15 : vector<32xf32> to vector<32x1xf32>
    %17 = vector.broadcast %16 : vector<32x1xf32> to vector<32x8xf32>
    %18 = arith.subf %14, %17 : vector<32x8xf32>
    %19 = math.exp %18 : vector<32x8xf32>
    %cst_13 = arith.constant dense<0.000000e+00> : vector<32xf32>
    %20 = vector.multi_reduction <add>, %19, %cst_13 [1] : vector<32x8xf32> to vector<32xf32>
    %21 = vector.shape_cast %20 : vector<32xf32> to vector<32x1xf32>
    %22 = math.log %21 : vector<32x1xf32>
    %23 = arith.addf %16, %22 : vector<32x1xf32>
    %24 = vector.extract_strided_slice %14 {offsets = [0, 0], sizes = [32, 1], strides = [1, 1]} : vector<32x8xf32> to vector<32x1xf32>
    %25 = arith.subf %23, %24 : vector<32x1xf32>
    %cst_14 = arith.constant dense<0.000000e+00> : vector<1xf32>
    %26 = vector.multi_reduction <add>, %25, %cst_14 [0] : vector<32x1xf32> to vector<1xf32>
    %27 = vector.shape_cast %26 : vector<1xf32> to vector<1x1xf32>
    %28 = vector.shape_cast %27 : vector<1x1xf32> to vector<1x1xf32>
    %29 = vector.broadcast %28 : vector<1x1xf32> to vector<1x128xf32>
    %c0_15 = arith.constant 0 : index
    %c0_16 = arith.constant 0 : index
    %c0_17 = arith.constant 0 : index
    %30 = vector.load %arg5[%c0_15, %c0_16, %c0_17] : memref<1x1x128xf32, #tpu.memory_space<vmem>>, vector<1x1x128xf32>
    %31 = vector.shape_cast %30 : vector<1x1x128xf32> to vector<1x128xf32>
    %32 = vector.shape_cast %29 : vector<1x128xf32> to vector<1x1x128xf32>
    tpu.vector_store %arg5[%c0_15, %c0_16, %c0_17], %32 {strides = array<i32>} : memref<1x1x128xf32, #tpu.memory_space<vmem>>, vector<1x1x128xf32>,
    return
  }
  func.func @transform_0(%arg0: i32) -> (i32, i32, i32) {
    %c0_i32 = arith.constant 0 : i32
    %c0_i32_0 = arith.constant 0 : i32
    %c0_i32_1 = arith.constant 0 : i32
    return %arg0, %c0_i32, %c0_i32_0 : i32, i32, i32
  }
  func.func @transform_1(%arg0: i32) -> (i32, i32, i32) {
    %c0_i32 = arith.constant 0 : i32
    %c0_i32_0 = arith.constant 0 : i32
    %c0_i32_1 = arith.constant 0 : i32
    return %arg0, %c0_i32, %c0_i32_0 : i32, i32, i32
  }
  func.func @transform_2(%arg0: i32) -> (i32, i32) {
    %c0_i32 = arith.constant 0 : i32
    %c0_i32_0 = arith.constant 0 : i32
    %c0_i32_1 = arith.constant 0 : i32
    return %c0_i32, %c0_i32_0 : i32, i32
  }
  func.func @transform_3(%arg0: i32) -> (i32, i32) {
    %c0_i32 = arith.constant 0 : i32
    %c0_i32_0 = arith.constant 0 : i32
    %c0_i32_1 = arith.constant 0 : i32
    return %c0_i32, %c0_i32_0 : i32, i32
  }
  func.func @transform_4(%arg0: i32) -> (i32, i32, i32) {
    %c0_i32 = arith.constant 0 : i32
    %c0_i32_0 = arith.constant 0 : i32
    %c0_i32_1 = arith.constant 0 : i32
    return %arg0, %c0_i32, %c0_i32_0 : i32, i32, i32
  }
}

</mosaic_0001>

<llo_original>
// kernel: tpu_custom_call.1
$region0: #{tpu_custom_call.1}
  #allocation0 [shape = 'u32[]', space=smem, size = 0x4, offset = 0x4, fixed_abs, tag = 'smem constant byte address 0x4 - core index']
  #allocation1 [shape = 'u32[72,128]{1,0:T(1,128)}', space=vmem, size = 0x9000, scoped, tag = 'internal scratch']
  %s0 = inlined_call_operand.hbm [shape: bf16[64,16,128], index: 0, kind: input, shape index: {}]
  %s1 = inlined_call_operand.hbm [shape: bf16[64,8,128], index: 1, kind: input, shape index: {}]
  %s2 = inlined_call_operand.hbm [shape: bf16[128,128], index: 2, kind: input, shape index: {}]
  %s3 = inlined_call_operand.hbm [shape: bf16[128,128], index: 3, kind: input, shape index: {}]
  %s4 = inlined_call_operand.hbm [shape: f32[2,1,128], index: 4, kind: output, shape index: {}]
  %s5 = sld [smem:[#allocation0]]
  $region65: #{tpu_custom_call.1} parent=0
    _
  %s7 = ssub.s32 1, %s5
  %s8 = scalar_select 0, %s7, %s5
  $region1: #{tpu_custom_call.1} parent=0
    #allocation2 [shape = 'u8[262144]{0}', space=vmem, size = 0x40000, scoped, tag = 'input window, operand 0']
    #allocation3 [shape = 's32[2]{0}', space=sflag, size = 0x8, scoped, tag = 'scoped memory for tpu_custom_call.1']
    #allocation4 [shape = 's32[2]{0}', space=sflag, size = 0x8, scoped, tag = 'scoped memory for tpu_custom_call.1']
    #allocation5 [shape = 'u8[131072]{0}', space=vmem, size = 0x20000, scoped, tag = 'input window, operand 1']
    #allocation6 [shape = 's32[2]{0}', space=sflag, size = 0x8, scoped, tag = 'scoped memory for tpu_custom_call.1']
    #allocation7 [shape = 'u8[32768]{0}', space=vmem, size = 0x8000, scoped, tag = 'input window, operand 2, single buffered']
    #allocation8 [shape = 'u8[32768]{0}', space=vmem, size = 0x8000, scoped, tag = 'input window, operand 3, single buffered']
    #allocation9 [shape = 's32[1]{0}', space=sflag, size = 0x4, scoped, tag = 'scoped memory for tpu_custom_call.1']
    #allocation10 [shape = 'u8[1024]{0}', space=vmem, size = 0x400, scoped, tag = 'output window, operand 0']
    %9 = vsyncpa [#allocation3], 0
    %s10 = scalar_lea.sflag [#allocation3], 1
    %11 = vsyncpa %s10, 0
    %12 = vsyncpa [#allocation6], 0
    %s13 = scalar_lea.sflag [#allocation6], 1
    %14 = vsyncpa %s13, 0
    %15 = vsyncpa [#allocation9], 0
    %16 = vsyncpa [#allocation4], 0
    %s17 = scalar_lea.sflag [#allocation4], 1
    %18 = vsyncpa %s17, 0
    loop: start=0, step=1, limit=4
    $region2: #{tpu_custom_call.1} parent=1 // loop_pre_header
      _
    $region3: #{tpu_custom_call.1} parent=1 // loop_header
      %s20 = sphi 0, %s24
      %p21 = scmp.ge.s32.totalorder %s20, 4
      %s30 = sphi 0, %s32
      %s33 = sphi 0, %s30
      %s34 = sphi 0, %s33
      %s50 = sphi 0, %s34
      %s56 = sphi 0, %s58
      %s59 = sphi 0, %s56
      %s60 = sphi 0, %s59
      %s76 = sphi 0, %s60
      %s80 = sphi 0, %s80
      %s82 = sphi 0, %s80
      %s83 = sphi 0, %s82
      %s97 = sphi 0, %s83
      %s101 = sphi 0, %s101
      %s103 = sphi 0, %s101
      %s104 = sphi 0, %s103
      %s118 = sphi 0, %s104
      %s124 = sphi 0, %s126
      %s127 = sphi 0, %s124
      %s128 = sphi 0, %s127
      %s144 = sphi 0, %s128
    $region4: #{tpu_custom_call.1} parent=1 // loop_header_branch
      %23 = sbr.rel (%p21) target = $region8
    $region5: #{tpu_custom_call.1} parent=1 // loop_body
      %s25 = ssub.s32 %s20, 1
      %s26 = ssub.s32 %s20, 2
      %s27 = sadd.s32 %s20, 1
      %s28 = ssub.s32 %s20, %s27
      %p29 = scmp.eq.s32.totalorder %s28, 0
      %s31 = sadd.s32 %s30, 1
      %s32 = scalar_select %p29, %s30, %s31
      %p35 = pneg %p29
      %p36 = scmp.eq.s32.totalorder %s20, 1
      %p37 = por %p35, %p36
      %p38 = scmp.ne.s32.totalorder %s30, %s33
      %p39 = scmp.eq.s32.totalorder %s20, 0
      %p40 = por %p38, %p39
      %p41 = scmp.ne.s32.totalorder %s30, %s33
      %p42 = scmp.eq.s32.totalorder %s25, 1
      %p43 = por %p41, %p42
      %p44 = scmp.ne.s32.totalorder %s33, %s34
      %p45 = scmp.eq.s32.totalorder %s25, 0
      %p46 = por %p44, %p45
      %p47 = scmp.ne.s32.totalorder %s33, %s34
      %p48 = scmp.eq.s32.totalorder %s26, 1
      %p49 = por %p47, %p48
      %p51 = scmp.ne.s32.totalorder %s34, %s50
      %p52 = scmp.eq.s32.totalorder %s26, 0
      %p53 = por %p51, %p52
      %s54 = ssub.s32 %s20, %s27
      %p55 = scmp.eq.s32.totalorder %s54, 0
      %s57 = sadd.s32 %s56, 1
      %s58 = scalar_select %p55, %s56, %s57
      %p61 = pneg %p55
      %p62 = scmp.eq.s32.totalorder %s20, 1
      %p63 = por %p61, %p62
      %p64 = scmp.ne.s32.totalorder %s56, %s59
      %p65 = scmp.eq.s32.totalorder %s20, 0
      %p66 = por %p64, %p65
      %p67 = scmp.ne.s32.totalorder %s56, %s59
      %p68 = scmp.eq.s32.totalorder %s25, 1
      %p69 = por %p67, %p68
      %p70 = scmp.ne.s32.totalorder %s59, %s60
      %p71 = scmp.eq.s32.totalorder %s25, 0
      %p72 = por %p70, %p71
      %p73 = scmp.ne.s32.totalorder %s59, %s60
      %p74 = scmp.eq.s32.totalorder %s26, 1
      %p75 = por %p73, %p74
      %p77 = scmp.ne.s32.totalorder %s60, %s76
      %p78 = scmp.eq.s32.totalorder %s26, 0
      %p79 = por %p77, %p78
      %s81 = sadd.s32 %s80, 1
      %p84 = scmp.eq.s32.totalorder %s20, 1
      %p85 = scmp.ne.s32.totalorder %s80, %s82
      %p86 = scmp.eq.s32.totalorder %s20, 0
      %p87 = por %p85, %p86
      %p88 = scmp.ne.s32.totalorder %s80, %s82
      %p89 = scmp.eq.s32.totalorder %s25, 1
      %p90 = por %p88, %p89
      %p91 = scmp.ne.s32.totalorder %s82, %s83
      %p92 = scmp.eq.s32.totalorder %s25, 0
      %p93 = por %p91, %p92
      %p94 = scmp.ne.s32.totalorder %s82, %s83
      %p95 = scmp.eq.s32.totalorder %s26, 1
      %p96 = por %p94, %p95
      %p98 = scmp.ne.s32.totalorder %s83, %s97
      %p99 = scmp.eq.s32.totalorder %s26, 0
      %p100 = por %p98, %p99
      %s102 = sadd.s32 %s101, 1
      %p105 = scmp.eq.s32.totalorder %s20, 1
      %p106 = scmp.ne.s32.totalorder %s101, %s103
      %p107 = scmp.eq.s32.totalorder %s20, 0
      %p108 = por %p106, %p107
      %p109 = scmp.ne.s32.totalorder %s101, %s103
      %p110 = scmp.eq.s32.totalorder %s25, 1
      %p111 = por %p109, %p110
      %p112 = scmp.ne.s32.totalorder %s103, %s104
      %p113 = scmp.eq.s32.totalorder %s25, 0
      %p114 = por %p112, %p113
      %p115 = scmp.ne.s32.totalorder %s103, %s104
      %p116 = scmp.eq.s32.totalorder %s26, 1
      %p117 = por %p115, %p116
      %p119 = scmp.ne.s32.totalorder %s104, %s118
      %p120 = scmp.eq.s32.totalorder %s26, 0
      %p121 = por %p119, %p120
      %s122 = ssub.s32 %s20, %s27
      %p123 = scmp.eq.s32.totalorder %s122, 0
      %s125 = sadd.s32 %s124, 1
      %s126 = scalar_select %p123, %s124, %s125
      %p129 = pneg %p123
      %p130 = scmp.eq.s32.totalorder %s20, 1
      %p131 = por %p129, %p130
      %p132 = scmp.ne.s32.totalorder %s124, %s127
      %p133 = scmp.eq.s32.totalorder %s20, 0
      %p134 = por %p132, %p133
      %p135 = scmp.ne.s32.totalorder %s124, %s127
      %p136 = scmp.eq.s32.totalorder %s25, 1
      %p137 = por %p135, %p136
      %p138 = scmp.ne.s32.totalorder %s127, %s128
      %p139 = scmp.eq.s32.totalorder %s25, 0
      %p140 = por %p138, %p139
      %p141 = scmp.ne.s32.totalorder %s127, %s128
      %p142 = scmp.eq.s32.totalorder %s26, 1
      %p143 = por %p141, %p142
      %p145 = scmp.ne.s32.totalorder %s128, %s144
      %p146 = scmp.eq.s32.totalorder %s26, 0
      %p147 = por %p145, %p146
      %p148 = scmp.le.s32.totalorder 1, %s20
      %p149 = scmp.lt.s32.totalorder %s20, 3
      %p150 = pnand %p148, %p149
      %p151 = pneg %p150
      // Predicated region
      $region9: #{tpu_custom_call.1} parent=5 // pred_check
        _
      $region10: #{tpu_custom_call.1} parent=5 // pred_check_branch
        %153 = sbr.rel (%p150) target = $region12
      $region11: #{tpu_custom_call.1} parent=5 // pred_region
        %s154 = ssub.s32 %s20, 1
        // Predicated region
        $region13: #{tpu_custom_call.1} parent=11 // pred_check
          %p155 = pneg %p93
        $region14: #{tpu_custom_call.1} parent=11 // pred_check_branch
          %157 = sbr.rel (%p155) target = $region16
        $region15: #{tpu_custom_call.1} parent=11 // pred_region
          %159 = vsyncadd [#allocation6], 0
          %s160 = sshll.u32 %s2, 4
          %s161 = int_to_ptr.hbm [resolvable:$true] %s160
          %s162 = sshll.u32 [#allocation7], 4
          %s163 = int_to_ptr.vmem [resolvable:$true] %s162
          %168 = dma.hbm_to_vmem [thread:$0]  %s161, 1024, %s163, [#allocation6], 64, 64, 4
        $region16: #{tpu_custom_call.1} parent=11 // pred_fallthru
          _
        // Predicated region
        $region17: #{tpu_custom_call.1} parent=11 // pred_check
          %p169 = pneg %p114
        $region18: #{tpu_custom_call.1} parent=11 // pred_check_branch
          %171 = sbr.rel (%p169) target = $region20
        $region19: #{tpu_custom_call.1} parent=11 // pred_region
          %173 = vsyncadd [#allocation9], 0
          %s174 = sshll.u32 %s3, 4
          %s175 = int_to_ptr.hbm [resolvable:$true] %s174
          %s176 = sshll.u32 [#allocation8], 4
          %s177 = int_to_ptr.vmem [resolvable:$true] %s176
          %182 = dma.hbm_to_vmem [thread:$0]  %s175, 1024, %s177, [#allocation9], 64, 64, 4
        $region20: #{tpu_custom_call.1} parent=11 // pred_fallthru
          _
      $region12: #{tpu_custom_call.1} parent=5 // pred_fallthru
        _
      %p183 = scmp.lt.s32.totalorder %s20, 2
      // Predicated region
      $region21: #{tpu_custom_call.1} parent=5 // pred_check
        %p184 = pneg %p183
      $region22: #{tpu_custom_call.1} parent=5 // pred_check_branch
        %186 = sbr.rel (%p184) target = $region24
      $region23: #{tpu_custom_call.1} parent=5 // pred_region
        // Predicated region
        $region25: #{tpu_custom_call.1} parent=23 // pred_check
          %p187 = pneg %p40
        $region26: #{tpu_custom_call.1} parent=23 // pred_check_branch
          %189 = sbr.rel (%p187) target = $region28
        $region27: #{tpu_custom_call.1} parent=23 // pred_region
          %s190 = sand.u32 %s30, 1
          %s191 = scalar_lea.sflag [#allocation3], %s190
          %s192 = sand.u32 %s30, 1
          %s193 = smul.addr %s192, 256
          %s194 = scalar_lea.vmem [#allocation2], %s193
          %s195 = smul.u32 32, %s20
          %197 = vsyncadd %s191, 0
          %s198 = smul.addr %s195, 2
          %s199 = smul.addr %s198, 4
          %s200 = scalar_lea.hbm %s0, %s199
          %s201 = sshll.u32 %s200, 4
          %s202 = int_to_ptr.hbm [resolvable:$true] %s201
          %s203 = sshll.u32 %s194, 4
          %s204 = int_to_ptr.vmem [resolvable:$true] %s203
          %209 = dma.hbm_to_vmem [thread:$0]  %s202, 4096, %s204, %s191, 64, 64, 4
        $region28: #{tpu_custom_call.1} parent=23 // pred_fallthru
          _
        // Predicated region
        $region29: #{tpu_custom_call.1} parent=23 // pred_check
          %p210 = pneg %p66
        $region30: #{tpu_custom_call.1} parent=23 // pred_check_branch
          %212 = sbr.rel (%p210) target = $region32
        $region31: #{tpu_custom_call.1} parent=23 // pred_region
          %s213 = sand.u32 %s20, 1
          %s214 = scalar_lea.sflag [#allocation6], %s213
          %s215 = sand.u32 %s56, 1
          %s216 = smul.addr %s215, 128
          %s217 = scalar_lea.vmem [#allocation5], %s216
          %s218 = smul.u32 32, %s20
          %220 = vsyncadd %s214, 0
          %s221 = smul.addr %s218, 4
          %s222 = scalar_lea.hbm %s1, %s221
          %s223 = sshll.u32 %s222, 4
          %s224 = int_to_ptr.hbm [resolvable:$true] %s223
          %s225 = sshll.u32 %s217, 4
          %s226 = int_to_ptr.vmem [resolvable:$true] %s225
          %231 = dma.hbm_to_vmem [thread:$0]  %s224, 2048, %s226, %s214, 64, 64, 4
        $region32: #{tpu_custom_call.1} parent=23 // pred_fallthru
          _
      $region24: #{tpu_custom_call.1} parent=5 // pred_fallthru
        _
      %p232 = scmp.le.s32.totalorder 1, %s20
      %p233 = scmp.lt.s32.totalorder %s20, 3
      %p234 = pnand %p232, %p233
      %p235 = pneg %p234
      // Predicated region
      $region33: #{tpu_custom_call.1} parent=5 // pred_check
        _
      $region34: #{tpu_custom_call.1} parent=5 // pred_check_branch
        %237 = sbr.rel (%p234) target = $region36
      $region35: #{tpu_custom_call.1} parent=5 // pred_region
        %s238 = ssub.s32 %s20, 1
        %s239 = sand.u32 %s33, 1
        %s240 = scalar_lea.sflag [#allocation3], %s239
        %s241 = sand.u32 %s33, 1
        %s242 = smul.addr %s241, 256
        %s243 = scalar_lea.vmem [#allocation2], %s242
        // Predicated region
        $region37: #{tpu_custom_call.1} parent=35 // pred_check
          %p244 = pneg %p46
        $region38: #{tpu_custom_call.1} parent=35 // pred_check_branch
          %246 = sbr.rel (%p244) target = $region40
        $region39: #{tpu_custom_call.1} parent=35 // pred_region
          %248 = dma.done %s240, 4096
        $region40: #{tpu_custom_call.1} parent=35 // pred_fallthru
          _
        %s249 = sand.u32 %s25, 1
        %s250 = scalar_lea.sflag [#allocation6], %s249
        %s251 = sand.u32 %s59, 1
        %s252 = smul.addr %s251, 128
        %s253 = scalar_lea.vmem [#allocation5], %s252
        // Predicated region
        $region41: #{tpu_custom_call.1} parent=35 // pred_check
          %p254 = pneg %p72
        $region42: #{tpu_custom_call.1} parent=35 // pred_check_branch
          %256 = sbr.rel (%p254) target = $region44
        $region43: #{tpu_custom_call.1} parent=35 // pred_region
          %258 = dma.done %s250, 2048
        $region44: #{tpu_custom_call.1} parent=35 // pred_fallthru
          _
        // Predicated region
        $region45: #{tpu_custom_call.1} parent=35 // pred_check
          %p259 = pneg %p93
        $region46: #{tpu_custom_call.1} parent=35 // pred_check_branch
          %261 = sbr.rel (%p259) target = $region48
        $region47: #{tpu_custom_call.1} parent=35 // pred_region
          %263 = dma.done [#allocation6], 1024
        $region48: #{tpu_custom_call.1} parent=35 // pred_fallthru
          _
        // Predicated region
        $region49: #{tpu_custom_call.1} parent=35 // pred_check
          %p264 = pneg %p114
        $region50: #{tpu_custom_call.1} parent=35 // pred_check_branch
          %266 = sbr.rel (%p264) target = $region52
        $region51: #{tpu_custom_call.1} parent=35 // pred_region
          %268 = dma.done [#allocation9], 1024
        $region52: #{tpu_custom_call.1} parent=35 // pred_fallthru
          _
        %s269 = sand.u32 %s33, 1
        %s270 = scalar_lea.sflag [#allocation3], %s269
        %s271 = sand.u32 %s33, 1
        %s272 = smul.addr %s271, 256
        %s273 = scalar_lea.vmem [#allocation2], %s272
        %p274 = pneg %p46
        %p275 = pneg %p43
        %s276 = sand.u32 %s25, 1
        %s277 = scalar_lea.sflag [#allocation6], %s276
        %s278 = sand.u32 %s59, 1
        %s279 = smul.addr %s278, 128
        %s280 = scalar_lea.vmem [#allocation5], %s279
        %p281 = pneg %p72
        %p282 = pneg %p69
        %p283 = pneg %p93
        %p284 = pneg %p90
        %p285 = pneg %p114
        %p286 = pneg %p111
        %p287 = pneg %p140
        %p288 = pneg %p137
        %s289 = sand.u32 %s127, 1
        %s290 = scalar_lea.sflag [#allocation4], %s289
        %s291 = sand.u32 %s127, 1
        %s292 = scalar_lea.vmem [#allocation10], %s291
        %s293 = smul.u32 32, %s25
        %s294 = smul.u32 32, %s25
        %v295 = vld [vmem:[%s243] sm:$0xf]
        %v296 = vld [vmem:[%s243 + $0x4] sm:$0xf]
        %v297 = vld [vmem:[%s243 + $0x8] sm:$0xf]
        %v298 = vld [vmem:[%s243 + $0xc] sm:$0xf]
        %v299 = vld [vmem:[%s243 + $0x10] sm:$0xf]
        %v300 = vld [vmem:[%s243 + $0x14] sm:$0xf]
        %v301 = vld [vmem:[%s243 + $0x18] sm:$0xf]
        %v302 = vld [vmem:[%s243 + $0x1c] sm:$0xf]
        %v303 = vld [vmem:[%s243 + $0x20] sm:$0xf]
        %v304 = vld [vmem:[%s243 + $0x24] sm:$0xf]
        %v305 = vld [vmem:[%s243 + $0x28] sm:$0xf]
        %v306 = vld [vmem:[%s243 + $0x2c] sm:$0xf]
        %v307 = vld [vmem:[%s243 + $0x30] sm:$0xf]
        %v308 = vld [vmem:[%s243 + $0x34] sm:$0xf]
        %v309 = vld [vmem:[%s243 + $0x38] sm:$0xf]
        %v310 = vld [vmem:[%s243 + $0x3c] sm:$0xf]
        %v311 = vld [vmem:[%s243 + $0x40] sm:$0xf]
        %v312 = vld [vmem:[%s243 + $0x44] sm:$0xf]
        %v313 = vld [vmem:[%s243 + $0x48] sm:$0xf]
        %v314 = vld [vmem:[%s243 + $0x4c] sm:$0xf]
        %v315 = vld [vmem:[%s243 + $0x50] sm:$0xf]
        %v316 = vld [vmem:[%s243 + $0x54] sm:$0xf]
        %v317 = vld [vmem:[%s243 + $0x58] sm:$0xf]
        %v318 = vld [vmem:[%s243 + $0x5c] sm:$0xf]
        %v319 = vld [vmem:[%s243 + $0x60] sm:$0xf]
        %v320 = vld [vmem:[%s243 + $0x64] sm:$0xf]
        %v321 = vld [vmem:[%s243 + $0x68] sm:$0xf]
        %v322 = vld [vmem:[%s243 + $0x6c] sm:$0xf]
        %v323 = vld [vmem:[%s243 + $0x70] sm:$0xf]
        %v324 = vld [vmem:[%s243 + $0x74] sm:$0xf]
        %v325 = vld [vmem:[%s243 + $0x78] sm:$0xf]
        %v326 = vld [vmem:[%s243 + $0x7c] sm:$0xf]
        %v327 = vld [vmem:[%s243 + $0x80] sm:$0xf]
        %v328 = vld [vmem:[%s243 + $0x84] sm:$0xf]
        %v329 = vld [vmem:[%s243 + $0x88] sm:$0xf]
        %v330 = vld [vmem:[%s243 + $0x8c] sm:$0xf]
        %v331 = vld [vmem:[%s243 + $0x90] sm:$0xf]
        %v332 = vld [vmem:[%s243 + $0x94] sm:$0xf]
        %v333 = vld [vmem:[%s243 + $0x98] sm:$0xf]
        %v334 = vld [vmem:[%s243 + $0x9c] sm:$0xf]
        %v335 = vld [vmem:[%s243 + $0xa0] sm:$0xf]
        %v336 = vld [vmem:[%s243 + $0xa4] sm:$0xf]
        %v337 = vld [vmem:[%s243 + $0xa8] sm:$0xf]
        %v338 = vld [vmem:[%s243 + $0xac] sm:$0xf]
        %v339 = vld [vmem:[%s243 + $0xb0] sm:$0xf]
        %v340 = vld [vmem:[%s243 + $0xb4] sm:$0xf]
        %v341 = vld [vmem:[%s243 + $0xb8] sm:$0xf]
        %v342 = vld [vmem:[%s243 + $0xbc] sm:$0xf]
        %v343 = vld [vmem:[%s243 + $0xc0] sm:$0xf]
        %v344 = vld [vmem:[%s243 + $0xc4] sm:$0xf]
        %v345 = vld [vmem:[%s243 + $0xc8] sm:$0xf]
        %v346 = vld [vmem:[%s243 + $0xcc] sm:$0xf]
        %v347 = vld [vmem:[%s243 + $0xd0] sm:$0xf]
        %v348 = vld [vmem:[%s243 + $0xd4] sm:$0xf]
        %v349 = vld [vmem:[%s243 + $0xd8] sm:$0xf]
        %v350 = vld [vmem:[%s243 + $0xdc] sm:$0xf]
        %v351 = vld [vmem:[%s243 + $0xe0] sm:$0xf]
        %v352 = vld [vmem:[%s243 + $0xe4] sm:$0xf]
        %v353 = vld [vmem:[%s243 + $0xe8] sm:$0xf]
        %v354 = vld [vmem:[%s243 + $0xec] sm:$0xf]
        %v355 = vld [vmem:[%s243 + $0xf0] sm:$0xf]
        %v356 = vld [vmem:[%s243 + $0xf4] sm:$0xf]
        %v357 = vld [vmem:[%s243 + $0xf8] sm:$0xf]
        %v358 = vld [vmem:[%s243 + $0xfc] sm:$0xf]
        %v359 = vld [vmem:[%s253] sm:$0xf]
        %v360 = vld [vmem:[%s253 + $0x4] sm:$0xf]
        %v361 = vld [vmem:[%s253 + $0x8] sm:$0xf]
        %v362 = vld [vmem:[%s253 + $0xc] sm:$0xf]
        %v363 = vld [vmem:[%s253 + $0x10] sm:$0xf]
        %v364 = vld [vmem:[%s253 + $0x14] sm:$0xf]
        %v365 = vld [vmem:[%s253 + $0x18] sm:$0xf]
        %v366 = vld [vmem:[%s253 + $0x1c] sm:$0xf]
        %v367 = vld [vmem:[%s253 + $0x20] sm:$0xf]
        %v368 = vld [vmem:[%s253 + $0x24] sm:$0xf]
        %v369 = vld [vmem:[%s253 + $0x28] sm:$0xf]
        %v370 = vld [vmem:[%s253 + $0x2c] sm:$0xf]
        %v371 = vld [vmem:[%s253 + $0x30] sm:$0xf]
        %v372 = vld [vmem:[%s253 + $0x34] sm:$0xf]
        %v373 = vld [vmem:[%s253 + $0x38] sm:$0xf]
        %v374 = vld [vmem:[%s253 + $0x3c] sm:$0xf]
        %v375 = vld [vmem:[%s253 + $0x40] sm:$0xf]
        %v376 = vld [vmem:[%s253 + $0x44] sm:$0xf]
        %v377 = vld [vmem:[%s253 + $0x48] sm:$0xf]
        %v378 = vld [vmem:[%s253 + $0x4c] sm:$0xf]
        %v379 = vld [vmem:[%s253 + $0x50] sm:$0xf]
        %v380 = vld [vmem:[%s253 + $0x54] sm:$0xf]
        %v381 = vld [vmem:[%s253 + $0x58] sm:$0xf]
        %v382 = vld [vmem:[%s253 + $0x5c] sm:$0xf]
        %v383 = vld [vmem:[%s253 + $0x60] sm:$0xf]
        %v384 = vld [vmem:[%s253 + $0x64] sm:$0xf]
        %v385 = vld [vmem:[%s253 + $0x68] sm:$0xf]
        %v386 = vld [vmem:[%s253 + $0x6c] sm:$0xf]
        %v387 = vld [vmem:[%s253 + $0x70] sm:$0xf]
        %v388 = vld [vmem:[%s253 + $0x74] sm:$0xf]
        %v389 = vld [vmem:[%s253 + $0x78] sm:$0xf]
        %v390 = vld [vmem:[%s253 + $0x7c] sm:$0xf]
        %v391 = vunpack.c.l.bf16 %v295
        %v392 = vunpack.c.l.bf16 %v296
        %v393 = vunpack.c.l.bf16 %v297
        %v394 = vunpack.c.l.bf16 %v298
        %v395 = vunpack.c.l.bf16 %v299
        %v396 = vunpack.c.l.bf16 %v300
        %v397 = vunpack.c.l.bf16 %v301
        %v398 = vunpack.c.l.bf16 %v302
        %v399 = vunpack.c.l.bf16 %v303
        %v400 = vunpack.c.l.bf16 %v304
        %v401 = vunpack.c.l.bf16 %v305
        %v402 = vunpack.c.l.bf16 %v306
        %v403 = vunpack.c.l.bf16 %v307
        %v404 = vunpack.c.l.bf16 %v308
        %v405 = vunpack.c.l.bf16 %v309
        %v406 = vunpack.c.l.bf16 %v310
        %v407 = vunpack.c.l.bf16 %v311
        %v408 = vunpack.c.l.bf16 %v312
        %v409 = vunpack.c.l.bf16 %v313
        %v410 = vunpack.c.l.bf16 %v314
        %v411 = vunpack.c.l.bf16 %v315
        %v412 = vunpack.c.l.bf16 %v316
        %v413 = vunpack.c.l.bf16 %v317
        %v414 = vunpack.c.l.bf16 %v318
        %v415 = vunpack.c.l.bf16 %v319
        %v416 = vunpack.c.l.bf16 %v320
        %v417 = vunpack.c.l.bf16 %v321
        %v418 = vunpack.c.l.bf16 %v322
        %v419 = vunpack.c.l.bf16 %v323
        %v420 = vunpack.c.l.bf16 %v324
        %v421 = vunpack.c.l.bf16 %v325
        %v422 = vunpack.c.l.bf16 %v326
        %v423 = vunpack.c.l.bf16 %v327
        %v424 = vunpack.c.l.bf16 %v328
        %v425 = vunpack.c.l.bf16 %v329
        %v426 = vunpack.c.l.bf16 %v330
        %v427 = vunpack.c.l.bf16 %v331
        %v428 = vunpack.c.l.bf16 %v332
        %v429 = vunpack.c.l.bf16 %v333
        %v430 = vunpack.c.l.bf16 %v334
        %v431 = vunpack.c.l.bf16 %v335
        %v432 = vunpack.c.l.bf16 %v336
        %v433 = vunpack.c.l.bf16 %v337
        %v434 = vunpack.c.l.bf16 %v338
        %v435 = vunpack.c.l.bf16 %v339
        %v436 = vunpack.c.l.bf16 %v340
        %v437 = vunpack.c.l.bf16 %v341
        %v438 = vunpack.c.l.bf16 %v342
        %v439 = vunpack.c.l.bf16 %v343
        %v440 = vunpack.c.l.bf16 %v344
        %v441 = vunpack.c.l.bf16 %v345
        %v442 = vunpack.c.l.bf16 %v346
        %v443 = vunpack.c.l.bf16 %v347
        %v444 = vunpack.c.l.bf16 %v348
        %v445 = vunpack.c.l.bf16 %v349
        %v446 = vunpack.c.l.bf16 %v350
        %v447 = vunpack.c.l.bf16 %v351
        %v448 = vunpack.c.l.bf16 %v352
        %v449 = vunpack.c.l.bf16 %v353
        %v450 = vunpack.c.l.bf16 %v354
        %v451 = vunpack.c.l.bf16 %v355
        %v452 = vunpack.c.l.bf16 %v356
        %v453 = vunpack.c.l.bf16 %v357
        %v454 = vunpack.c.l.bf16 %v358
        %v455 = vadd.f32 %v391, %v392
        %v456 = vrot.slane %v455, 4
        %v457 = vadd.f32 %v455, %v456
        %v458 = vrot.slane %v457, 2
        %v459 = vadd.f32 %v457, %v458
        %v460 = vrot.slane %v459, 1
        %v461 = vadd.f32 %v459, %v460
        %v462 = vadd.f32 %v393, %v394
        %v463 = vrot.slane %v462, 4
        %v464 = vadd.f32 %v462, %v463
        %v465 = vrot.slane %v464, 2
        %v466 = vadd.f32 %v464, %v465
        %v467 = vrot.slane %v466, 1
        %v468 = vadd.f32 %v466, %v467
        %v469 = vadd.f32 %v395, %v396
        %v470 = vrot.slane %v469, 4
        %v471 = vadd.f32 %v469, %v470
        %v472 = vrot.slane %v471, 2
        %v473 = vadd.f32 %v471, %v472
        %v474 = vrot.slane %v473, 1
        %v475 = vadd.f32 %v473, %v474
        %v476 = vadd.f32 %v397, %v398
        %v477 = vrot.slane %v476, 4
        %v478 = vadd.f32 %v476, %v477
        %v479 = vrot.slane %v478, 2
        %v480 = vadd.f32 %v478, %v479
        %v481 = vrot.slane %v480, 1
        %v482 = vadd.f32 %v480, %v481
        %v483 = vadd.f32 %v399, %v400
        %v484 = vrot.slane %v483, 4
        %v485 = vadd.f32 %v483, %v484
        %v486 = vrot.slane %v485, 2
        %v487 = vadd.f32 %v485, %v486
        %v488 = vrot.slane %v487, 1
        %v489 = vadd.f32 %v487, %v488
        %v490 = vadd.f32 %v401, %v402
        %v491 = vrot.slane %v490, 4
        %v492 = vadd.f32 %v490, %v491
        %v493 = vrot.slane %v492, 2
        %v494 = vadd.f32 %v492, %v493
        %v495 = vrot.slane %v494, 1
        %v496 = vadd.f32 %v494, %v495
        %v497 = vadd.f32 %v403, %v404
        %v498 = vrot.slane %v497, 4
        %v499 = vadd.f32 %v497, %v498
        %v500 = vrot.slane %v499, 2
        %v501 = vadd.f32 %v499, %v500
        %v502 = vrot.slane %v501, 1
        %v503 = vadd.f32 %v501, %v502
        %v504 = vadd.f32 %v405, %v406
        %v505 = vrot.slane %v504, 4
        %v506 = vadd.f32 %v504, %v505
        %v507 = vrot.slane %v506, 2
        %v508 = vadd.f32 %v506, %v507
        %v509 = vrot.slane %v508, 1
        %v510 = vadd.f32 %v508, %v509
        %v511 = vadd.f32 %v407, %v408
        %v512 = vrot.slane %v511, 4
        %v513 = vadd.f32 %v511, %v512
        %v514 = vrot.slane %v513, 2
        %v515 = vadd.f32 %v513, %v514
        %v516 = vrot.slane %v515, 1
        %v517 = vadd.f32 %v515, %v516
        %v518 = vadd.f32 %v409, %v410
        %v519 = vrot.slane %v518, 4
        %v520 = vadd.f32 %v518, %v519
        %v521 = vrot.slane %v520, 2
        %v522 = vadd.f32 %v520, %v521
        %v523 = vrot.slane %v522, 1
        %v524 = vadd.f32 %v522, %v523
        %v525 = vadd.f32 %v411, %v412
        %v526 = vrot.slane %v525, 4
        %v527 = vadd.f32 %v525, %v526
        %v528 = vrot.slane %v527, 2
        %v529 = vadd.f32 %v527, %v528
        %v530 = vrot.slane %v529, 1
        %v531 = vadd.f32 %v529, %v530
        %v532 = vadd.f32 %v413, %v414
        %v533 = vrot.slane %v532, 4
        %v534 = vadd.f32 %v532, %v533
        %v535 = vrot.slane %v534, 2
        %v536 = vadd.f32 %v534, %v535
        %v537 = vrot.slane %v536, 1
        %v538 = vadd.f32 %v536, %v537
        %v539 = vadd.f32 %v415, %v416
        %v540 = vrot.slane %v539, 4
        %v541 = vadd.f32 %v539, %v540
        %v542 = vrot.slane %v541, 2
        %v543 = vadd.f32 %v541, %v542
        %v544 = vrot.slane %v543, 1
        %v545 = vadd.f32 %v543, %v544
        %v546 = vadd.f32 %v417, %v418
        %v547 = vrot.slane %v546, 4
        %v548 = vadd.f32 %v546, %v547
        %v549 = vrot.slane %v548, 2
        %v550 = vadd.f32 %v548, %v549
        %v551 = vrot.slane %v550, 1
        %v552 = vadd.f32 %v550, %v551
        %v553 = vadd.f32 %v419, %v420
        %v554 = vrot.slane %v553, 4
        %v555 = vadd.f32 %v553, %v554
        %v556 = vrot.slane %v555, 2
        %v557 = vadd.f32 %v555, %v556
        %v558 = vrot.slane %v557, 1
        %v559 = vadd.f32 %v557, %v558
        %v560 = vadd.f32 %v421, %v422
        %v561 = vrot.slane %v560, 4
        %v562 = vadd.f32 %v560, %v561
        %v563 = vrot.slane %v562, 2
        %v564 = vadd.f32 %v562, %v563
        %v565 = vrot.slane %v564, 1
        %v566 = vadd.f32 %v564, %v565
        %v567 = vadd.f32 %v423, %v424
        %v568 = vrot.slane %v567, 4
        %v569 = vadd.f32 %v567, %v568
        %v570 = vrot.slane %v569, 2
        %v571 = vadd.f32 %v569, %v570
        %v572 = vrot.slane %v571, 1
        %v573 = vadd.f32 %v571, %v572
        %v574 = vadd.f32 %v425, %v426
        %v575 = vrot.slane %v574, 4
        %v576 = vadd.f32 %v574, %v575
        %v577 = vrot.slane %v576, 2
        %v578 = vadd.f32 %v576, %v577
        %v579 = vrot.slane %v578, 1
        %v580 = vadd.f32 %v578, %v579
        %v581 = vadd.f32 %v427, %v428
        %v582 = vrot.slane %v581, 4
        %v583 = vadd.f32 %v581, %v582
        %v584 = vrot.slane %v583, 2
        %v585 = vadd.f32 %v583, %v584
        %v586 = vrot.slane %v585, 1
        %v587 = vadd.f32 %v585, %v586
        %v588 = vadd.f32 %v429, %v430
        %v589 = vrot.slane %v588, 4
        %v590 = vadd.f32 %v588, %v589
        %v591 = vrot.slane %v590, 2
        %v592 = vadd.f32 %v590, %v591
        %v593 = vrot.slane %v592, 1
        %v594 = vadd.f32 %v592, %v593
        %v595 = vadd.f32 %v431, %v432
        %v596 = vrot.slane %v595, 4
        %v597 = vadd.f32 %v595, %v596
        %v598 = vrot.slane %v597, 2
        %v599 = vadd.f32 %v597, %v598
        %v600 = vrot.slane %v599, 1
        %v601 = vadd.f32 %v599, %v600
        %v602 = vadd.f32 %v433, %v434
        %v603 = vrot.slane %v602, 4
        %v604 = vadd.f32 %v602, %v603
        %v605 = vrot.slane %v604, 2
        %v606 = vadd.f32 %v604, %v605
        %v607 = vrot.slane %v606, 1
        %v608 = vadd.f32 %v606, %v607
        %v609 = vadd.f32 %v435, %v436
        %v610 = vrot.slane %v609, 4
        %v611 = vadd.f32 %v609, %v610
        %v612 = vrot.slane %v611, 2
        %v613 = vadd.f32 %v611, %v612
        %v614 = vrot.slane %v613, 1
        %v615 = vadd.f32 %v613, %v614
        %v616 = vadd.f32 %v437, %v438
        %v617 = vrot.slane %v616, 4
        %v618 = vadd.f32 %v616, %v617
        %v619 = vrot.slane %v618, 2
        %v620 = vadd.f32 %v618, %v619
        %v621 = vrot.slane %v620, 1
        %v622 = vadd.f32 %v620, %v621
        %v623 = vadd.f32 %v439, %v440
        %v624 = vrot.slane %v623, 4
        %v625 = vadd.f32 %v623, %v624
        %v626 = vrot.slane %v625, 2
        %v627 = vadd.f32 %v625, %v626
        %v628 = vrot.slane %v627, 1
        %v629 = vadd.f32 %v627, %v628
        %v630 = vadd.f32 %v441, %v442
        %v631 = vrot.slane %v630, 4
        %v632 = vadd.f32 %v630, %v631
        %v633 = vrot.slane %v632, 2
        %v634 = vadd.f32 %v632, %v633
        %v635 = vrot.slane %v634, 1
        %v636 = vadd.f32 %v634, %v635
        %v637 = vadd.f32 %v443, %v444
        %v638 = vrot.slane %v637, 4
        %v639 = vadd.f32 %v637, %v638
        %v640 = vrot.slane %v639, 2
        %v641 = vadd.f32 %v639, %v640
        %v642 = vrot.slane %v641, 1
        %v643 = vadd.f32 %v641, %v642
        %v644 = vadd.f32 %v445, %v446
        %v645 = vrot.slane %v644, 4
        %v646 = vadd.f32 %v644, %v645
        %v647 = vrot.slane %v646, 2
        %v648 = vadd.f32 %v646, %v647
        %v649 = vrot.slane %v648, 1
        %v650 = vadd.f32 %v648, %v649
        %v651 = vadd.f32 %v447, %v448
        %v652 = vrot.slane %v651, 4
        %v653 = vadd.f32 %v651, %v652
        %v654 = vrot.slane %v653, 2
        %v655 = vadd.f32 %v653, %v654
        %v656 = vrot.slane %v655, 1
        %v657 = vadd.f32 %v655, %v656
        %v658 = vadd.f32 %v449, %v450
        %v659 = vrot.slane %v658, 4
        %v660 = vadd.f32 %v658, %v659
        %v661 = vrot.slane %v660, 2
        %v662 = vadd.f32 %v660, %v661
        %v663 = vrot.slane %v662, 1
        %v664 = vadd.f32 %v662, %v663
        %v665 = vadd.f32 %v451, %v452
        %v666 = vrot.slane %v665, 4
        %v667 = vadd.f32 %v665, %v666
        %v668 = vrot.slane %v667, 2
        %v669 = vadd.f32 %v667, %v668
        %v670 = vrot.slane %v669, 1
        %v671 = vadd.f32 %v669, %v670
        %v672 = vadd.f32 %v453, %v454
        %v673 = vrot.slane %v672, 4
        %v674 = vadd.f32 %v672, %v673
        %v675 = vrot.slane %v674, 2
        %v676 = vadd.f32 %v674, %v675
        %v677 = vrot.slane %v676, 1
        %v678 = vadd.f32 %v676, %v677
        %v679 = vpack.c.bf16 %v461, %v461
        %v680 = vpack.c.bf16 %v468, %v468
        %v681 = vpack.c.bf16 %v475, %v475
        %v682 = vpack.c.bf16 %v482, %v482
        %v683 = vpack.c.bf16 %v489, %v489
        %v684 = vpack.c.bf16 %v496, %v496
        %v685 = vpack.c.bf16 %v503, %v503
        %v686 = vpack.c.bf16 %v510, %v510
        %v687 = vpack.c.bf16 %v517, %v517
        %v688 = vpack.c.bf16 %v524, %v524
        %v689 = vpack.c.bf16 %v531, %v531
        %v690 = vpack.c.bf16 %v538, %v538
        %v691 = vpack.c.bf16 %v545, %v545
        %v692 = vpack.c.bf16 %v552, %v552
        %v693 = vpack.c.bf16 %v559, %v559
        %v694 = vpack.c.bf16 %v566, %v566
        %v695 = vpack.c.bf16 %v573, %v573
        %v696 = vpack.c.bf16 %v580, %v580
        %v697 = vpack.c.bf16 %v587, %v587
        %v698 = vpack.c.bf16 %v594, %v594
        %v699 = vpack.c.bf16 %v601, %v601
        %v700 = vpack.c.bf16 %v608, %v608
        %v701 = vpack.c.bf16 %v615, %v615
        %v702 = vpack.c.bf16 %v622, %v622
        %v703 = vpack.c.bf16 %v629, %v629
        %v704 = vpack.c.bf16 %v636, %v636
        %v705 = vpack.c.bf16 %v643, %v643
        %v706 = vpack.c.bf16 %v650, %v650
        %v707 = vpack.c.bf16 %v657, %v657
        %v708 = vpack.c.bf16 %v664, %v664
        %v709 = vpack.c.bf16 %v671, %v671
        %v710 = vpack.c.bf16 %v678, %v678
        %v711 = vld [vmem:[#allocation7] sm:$0xf]
        %v712 = vld [vmem:[#allocation7 + $0x4] sm:$0xf]
        %v713 = vld [vmem:[#allocation7 + $0x8] sm:$0xf]
        %v714 = vld [vmem:[#allocation7 + $0xc] sm:$0xf]
        %v715 = vld [vmem:[#allocation7 + $0x10] sm:$0xf]
        %v716 = vld [vmem:[#allocation7 + $0x14] sm:$0xf]
        %v717 = vld [vmem:[#allocation7 + $0x18] sm:$0xf]
        %v718 = vld [vmem:[#allocation7 + $0x1c] sm:$0xf]
        %v719 = vld [vmem:[#allocation7 + $0x20] sm:$0xf]
        %v720 = vld [vmem:[#allocation7 + $0x24] sm:$0xf]
        %v721 = vld [vmem:[#allocation7 + $0x28] sm:$0xf]
        %v722 = vld [vmem:[#allocation7 + $0x2c] sm:$0xf]
        %v723 = vld [vmem:[#allocation7 + $0x30] sm:$0xf]
        %v724 = vld [vmem:[#allocation7 + $0x34] sm:$0xf]
        %v725 = vld [vmem:[#allocation7 + $0x38] sm:$0xf]
        %v726 = vld [vmem:[#allocation7 + $0x3c] sm:$0xf]
        %v759 = vunpack.c.l.b16 %v679
        %v760 = vunpack.c.l.b16 %v680
        %v761 = vunpack.c.l.b16 %v681
        %v762 = vunpack.c.l.b16 %v682
        %v763 = vunpack.c.l.b16 %v683
        %v764 = vunpack.c.l.b16 %v684
        %v765 = vunpack.c.l.b16 %v685
        %v766 = vunpack.c.l.b16 %v686
        %v767 = vunpack.c.l.b16 %v687
        %v768 = vunpack.c.l.b16 %v688
        %v769 = vunpack.c.l.b16 %v689
        %v770 = vunpack.c.l.b16 %v690
        %v771 = vunpack.c.l.b16 %v691
        %v772 = vunpack.c.l.b16 %v692
        %v773 = vunpack.c.l.b16 %v693
        %v774 = vunpack.c.l.b16 %v694
        %v775 = vunpack.c.l.b16 %v695
        %v776 = vunpack.c.l.b16 %v696
        %v777 = vunpack.c.l.b16 %v697
        %v778 = vunpack.c.l.b16 %v698
        %v779 = vunpack.c.l.b16 %v699
        %v780 = vunpack.c.l.b16 %v700
        %v781 = vunpack.c.l.b16 %v701
        %v782 = vunpack.c.l.b16 %v702
        %v783 = vunpack.c.l.b16 %v703
        %v784 = vunpack.c.l.b16 %v704
        %v785 = vunpack.c.l.b16 %v705
        %v786 = vunpack.c.l.b16 %v706
        %v787 = vunpack.c.l.b16 %v707
        %v788 = vunpack.c.l.b16 %v708
        %v789 = vunpack.c.l.b16 %v709
        %v790 = vunpack.c.l.b16 %v710
        %vm791 = vcmask 1041409
        %v792 = vsel %vm791, %v760, %v759
        %vm793 = vcmask 1042434
        %v794 = vsel %vm793, %v761, %v792
        %vm795 = vcmask 1043459
        %v796 = vsel %vm795, %v762, %v794
        %vm797 = vcmask 1044484
        %v798 = vsel %vm797, %v763, %v796
        %vm799 = vcmask 1045509
        %v800 = vsel %vm799, %v764, %v798
        %vm801 = vcmask 1046534
        %v802 = vsel %vm801, %v765, %v800
        %vm803 = vcmask 1047559
        %v804 = vsel %vm803, %v766, %v802
        %v805 = vsel %vm791, %v768, %v767
        %v806 = vsel %vm793, %v769, %v805
        %v807 = vsel %vm795, %v770, %v806
        %v808 = vsel %vm797, %v771, %v807
        %v809 = vsel %vm799, %v772, %v808
        %v810 = vsel %vm801, %v773, %v809
        %v811 = vsel %vm803, %v774, %v810
        %v812 = vsel %vm791, %v776, %v775
        %v813 = vsel %vm793, %v777, %v812
        %v814 = vsel %vm795, %v778, %v813
        %v815 = vsel %vm797, %v779, %v814
        %v816 = vsel %vm799, %v780, %v815
        %v817 = vsel %vm801, %v781, %v816
        %v818 = vsel %vm803, %v782, %v817
        %v819 = vsel %vm791, %v784, %v783
        %v820 = vsel %vm793, %v785, %v819
        %v821 = vsel %vm795, %v786, %v820
        %v822 = vsel %vm797, %v787, %v821
        %v823 = vsel %vm799, %v788, %v822
        %v824 = vsel %vm801, %v789, %v823
        %v825 = vsel %vm803, %v790, %v824
        %v826 = vpack.c.b16 %v811, %v804
        %v827 = vpack.c.b16 %v825, %v818
        %v846 = vunpack.c.l.b16 %v711
        %v847 = vunpack.c.l.b16 %v712
        %v848 = vunpack.c.l.b16 %v713
        %v849 = vunpack.c.l.b16 %v714
        %v850 = vunpack.c.l.b16 %v715
        %v851 = vunpack.c.l.b16 %v716
        %v852 = vunpack.c.l.b16 %v717
        %v853 = vunpack.c.l.b16 %v718
        %v854 = vunpack.c.l.b16 %v719
        %v855 = vunpack.c.l.b16 %v720
        %v856 = vunpack.c.l.b16 %v721
        %v857 = vunpack.c.l.b16 %v722
        %v858 = vunpack.c.l.b16 %v723
        %v859 = vunpack.c.l.b16 %v724
        %v860 = vunpack.c.l.b16 %v725
        %v861 = vunpack.c.l.b16 %v726
        %v862 = vpack.c.b16 %v847, %v846
        %v863 = vpack.c.b16 %v849, %v848
        %v864 = vpack.c.b16 %v851, %v850
        %v865 = vpack.c.b16 %v853, %v852
        %v866 = vpack.c.b16 %v855, %v854
        %v867 = vpack.c.b16 %v857, %v856
        %v868 = vpack.c.b16 %v859, %v858
        %v869 = vpack.c.b16 %v861, %v860
        %878 = vmatpush.bf16.msra.mxu0 %v869
        %879 = vmatpush.bf16.msra.mxu0 %v868
        %880 = vmatpush.bf16.msra.mxu0 %v867
        %881 = vmatpush.bf16.msra.mxu0 %v866
        %882 = vmatpush.bf16.msra.mxu0 %v865
        %883 = vmatpush.bf16.msra.mxu0 %v864
        %884 = vmatpush.bf16.msra.mxu0 %v863
        %885 = vmatpush.bf16.msra.mxu0 %v862
        %886 = vmatmul.bf16.gmra.mxu0 %v826
        %v887 = vpop.f32.mrf.mxu0
        %v888 = vadd.f32 0.0, %v887
        %v889 = vpop.f32.mrf.mxu0
        %v890 = vadd.f32 0.0, %v889
        %891 = vmatmul.bf16.gmra.mxu0 %v827
        %v892 = vpop.f32.mrf.mxu0
        %v893 = vadd.f32 0.0, %v892
        %v894 = vpop.f32.mrf.mxu0
        %v895 = vadd.f32 0.0, %v894
        %896 = vdwg.mxu0
        %v897 = vpack.c.bf16 %v890, %v888
        %v898 = vpack.c.bf16 %v895, %v893
        %v899 = vld [vmem:[#allocation8] sm:$0xf]
        %v900 = vld [vmem:[#allocation8 + $0x4] sm:$0xf]
        %v901 = vld [vmem:[#allocation8 + $0x8] sm:$0xf]
        %v902 = vld [vmem:[#allocation8 + $0xc] sm:$0xf]
        %v903 = vld [vmem:[#allocation8 + $0x10] sm:$0xf]
        %v904 = vld [vmem:[#allocation8 + $0x14] sm:$0xf]
        %v905 = vld [vmem:[#allocation8 + $0x18] sm:$0xf]
        %v906 = vld [vmem:[#allocation8 + $0x1c] sm:$0xf]
        %v907 = vld [vmem:[#allocation8 + $0x20] sm:$0xf]
        %v908 = vld [vmem:[#allocation8 + $0x24] sm:$0xf]
        %v909 = vld [vmem:[#allocation8 + $0x28] sm:$0xf]
        %v910 = vld [vmem:[#allocation8 + $0x2c] sm:$0xf]
        %v911 = vld [vmem:[#allocation8 + $0x30] sm:$0xf]
        %v912 = vld [vmem:[#allocation8 + $0x34] sm:$0xf]
        %v913 = vld [vmem:[#allocation8 + $0x38] sm:$0xf]
        %v914 = vld [vmem:[#allocation8 + $0x3c] sm:$0xf]
        %v931 = vunpack.c.l.b16 %v899
        %v932 = vunpack.c.l.b16 %v900
        %v933 = vunpack.c.l.b16 %v901
        %v934 = vunpack.c.l.b16 %v902
        %v935 = vunpack.c.l.b16 %v903
        %v936 = vunpack.c.l.b16 %v904
        %v937 = vunpack.c.l.b16 %v905
        %v938 = vunpack.c.l.b16 %v906
        %v939 = vunpack.c.l.b16 %v907
        %v940 = vunpack.c.l.b16 %v908
        %v941 = vunpack.c.l.b16 %v909
        %v942 = vunpack.c.l.b16 %v910
        %v943 = vunpack.c.l.b16 %v911
        %v944 = vunpack.c.l.b16 %v912
        %v945 = vunpack.c.l.b16 %v913
        %v946 = vunpack.c.l.b16 %v914
        %v947 = vpack.c.b16 %v932, %v931
        %v948 = vpack.c.b16 %v934, %v933
        %v949 = vpack.c.b16 %v936, %v935
        %v950 = vpack.c.b16 %v938, %v937
        %v951 = vpack.c.b16 %v940, %v939
        %v952 = vpack.c.b16 %v942, %v941
        %v953 = vpack.c.b16 %v944, %v943
        %v954 = vpack.c.b16 %v946, %v945
        %963 = vmatpush.bf16.msra.mxu0 %v954
        %964 = vmatpush.bf16.msra.mxu0 %v953
        %965 = vmatpush.bf16.msra.mxu0 %v952
        %966 = vmatpush.bf16.msra.mxu0 %v951
        %967 = vmatpush.bf16.msra.mxu0 %v950
        %968 = vmatpush.bf16.msra.mxu0 %v949
        %969 = vmatpush.bf16.msra.mxu0 %v948
        %970 = vmatpush.bf16.msra.mxu0 %v947
        %971 = vmatmul.bf16.gmra.mxu0 %v897
        %v972 = vpop.f32.mrf.mxu0
        %v973 = vadd.f32 0.0, %v972
        %v974 = vpop.f32.mrf.mxu0
        %v975 = vadd.f32 0.0, %v974
        %976 = vmatmul.bf16.gmra.mxu0 %v898
        %v977 = vpop.f32.mrf.mxu0
        %v978 = vadd.f32 0.0, %v977
        %v979 = vpop.f32.mrf.mxu0
        %v980 = vadd.f32 0.0, %v979
        %981 = vdwg.mxu0
        %v982 = vunpack.c.l.bf16 %v359
        %v983 = vunpack.c.l.bf16 %v360
        %v984 = vunpack.c.l.bf16 %v361
        %v985 = vunpack.c.l.bf16 %v362
        %v986 = vunpack.c.l.bf16 %v363
        %v987 = vunpack.c.l.bf16 %v364
        %v988 = vunpack.c.l.bf16 %v365
        %v989 = vunpack.c.l.bf16 %v366
        %v990 = vunpack.c.l.bf16 %v367
        %v991 = vunpack.c.l.bf16 %v368
        %v992 = vunpack.c.l.bf16 %v369
        %v993 = vunpack.c.l.bf16 %v370
        %v994 = vunpack.c.l.bf16 %v371
        %v995 = vunpack.c.l.bf16 %v372
        %v996 = vunpack.c.l.bf16 %v373
        %v997 = vunpack.c.l.bf16 %v374
        %v998 = vunpack.c.l.bf16 %v375
        %v999 = vunpack.c.l.bf16 %v376
        %v1000 = vunpack.c.l.bf16 %v377
        %v1001 = vunpack.c.l.bf16 %v378
        %v1002 = vunpack.c.l.bf16 %v379
        %v1003 = vunpack.c.l.bf16 %v380
        %v1004 = vunpack.c.l.bf16 %v381
        %v1005 = vunpack.c.l.bf16 %v382
        %v1006 = vunpack.c.l.bf16 %v383
        %v1007 = vunpack.c.l.bf16 %v384
        %v1008 = vunpack.c.l.bf16 %v385
        %v1009 = vunpack.c.l.bf16 %v386
        %v1010 = vunpack.c.l.bf16 %v387
        %v1011 = vunpack.c.l.bf16 %v388
        %v1012 = vunpack.c.l.bf16 %v389
        %v1013 = vunpack.c.l.bf16 %v390
        %v1018 = vrot.slane %v973, 1
        %v1019 = vrot.slane %v973, 2
        %v1020 = vrot.slane %v973, 3
        %v1021 = vrot.slane %v973, 4
        %v1022 = vrot.slane %v973, 5
        %v1023 = vrot.slane %v973, 6
        %v1024 = vrot.slane %v973, 7
        %v1025 = vrot.slane %v975, 1
        %v1026 = vrot.slane %v975, 2
        %v1027 = vrot.slane %v975, 3
        %v1028 = vrot.slane %v975, 4
        %v1029 = vrot.slane %v975, 5
        %v1030 = vrot.slane %v975, 6
        %v1031 = vrot.slane %v975, 7
        %v1032 = vrot.slane %v978, 1
        %v1033 = vrot.slane %v978, 2
        %v1034 = vrot.slane %v978, 3
        %v1035 = vrot.slane %v978, 4
        %v1036 = vrot.slane %v978, 5
        %v1037 = vrot.slane %v978, 6
        %v1038 = vrot.slane %v978, 7
        %v1039 = vrot.slane %v980, 1
        %v1040 = vrot.slane %v980, 2
        %v1041 = vrot.slane %v980, 3
        %v1042 = vrot.slane %v980, 4
        %v1043 = vrot.slane %v980, 5
        %v1044 = vrot.slane %v980, 6
        %v1045 = vrot.slane %v980, 7
        %v1046 = vperm.slane %v973, 0
        %v1047 = vperm.slane %v1018, 0
        %v1048 = vperm.slane %v1019, 0
        %v1049 = vperm.slane %v1020, 0
        %v1050 = vperm.slane %v1021, 0
        %v1051 = vperm.slane %v1022, 0
        %v1052 = vperm.slane %v1023, 0
        %v1053 = vperm.slane %v1024, 0
        %v1054 = vperm.slane %v975, 0
        %v1055 = vperm.slane %v1025, 0
        %v1056 = vperm.slane %v1026, 0
        %v1057 = vperm.slane %v1027, 0
        %v1058 = vperm.slane %v1028, 0
        %v1059 = vperm.slane %v1029, 0
        %v1060 = vperm.slane %v1030, 0
        %v1061 = vperm.slane %v1031, 0
        %v1062 = vperm.slane %v978, 0
        %v1063 = vperm.slane %v1032, 0
        %v1064 = vperm.slane %v1033, 0
        %v1065 = vperm.slane %v1034, 0
        %v1066 = vperm.slane %v1035, 0
        %v1067 = vperm.slane %v1036, 0
        %v1068 = vperm.slane %v1037, 0
        %v1069 = vperm.slane %v1038, 0
        %v1070 = vperm.slane %v980, 0
        %v1071 = vperm.slane %v1039, 0
        %v1072 = vperm.slane %v1040, 0
        %v1073 = vperm.slane %v1041, 0
        %v1074 = vperm.slane %v1042, 0
        %v1075 = vperm.slane %v1043, 0
        %v1076 = vperm.slane %v1044, 0
        %v1077 = vperm.slane %v1045, 0
        %v1110 = vmul.f32 %v982, %v1046
        %v1111 = vmul.f32 %v983, %v1047
        %v1112 = vmul.f32 %v984, %v1048
        %v1113 = vmul.f32 %v985, %v1049
        %v1114 = vmul.f32 %v986, %v1050
        %v1115 = vmul.f32 %v987, %v1051
        %v1116 = vmul.f32 %v988, %v1052
        %v1117 = vmul.f32 %v989, %v1053
        %v1118 = vmul.f32 %v990, %v1054
        %v1119 = vmul.f32 %v991, %v1055
        %v1120 = vmul.f32 %v992, %v1056
        %v1121 = vmul.f32 %v993, %v1057
        %v1122 = vmul.f32 %v994, %v1058
        %v1123 = vmul.f32 %v995, %v1059
        %v1124 = vmul.f32 %v996, %v1060
        %v1125 = vmul.f32 %v997, %v1061
        %v1126 = vmul.f32 %v998, %v1062
        %v1127 = vmul.f32 %v999, %v1063
        %v1128 = vmul.f32 %v1000, %v1064
        %v1129 = vmul.f32 %v1001, %v1065
        %v1130 = vmul.f32 %v1002, %v1066
        %v1131 = vmul.f32 %v1003, %v1067
        %v1132 = vmul.f32 %v1004, %v1068
        %v1133 = vmul.f32 %v1005, %v1069
        %v1134 = vmul.f32 %v1006, %v1070
        %v1135 = vmul.f32 %v1007, %v1071
        %v1136 = vmul.f32 %v1008, %v1072
        %v1137 = vmul.f32 %v1009, %v1073
        %v1138 = vmul.f32 %v1010, %v1074
        %v1139 = vmul.f32 %v1011, %v1075
        %v1140 = vmul.f32 %v1012, %v1076
        %v1141 = vmul.f32 %v1013, %v1077
        %1142 = vadd.xlane.f32.xlu0 %v1110
        %v1143 = vpop.xlane.xlu0 %1142
        %1144 = vadd.xlane.f32.xlu0 %v1111
        %v1145 = vpop.xlane.xlu0 %1144
        %1146 = vadd.xlane.f32.xlu0 %v1112
        %v1147 = vpop.xlane.xlu0 %1146
        %1148 = vadd.xlane.f32.xlu0 %v1113
        %v1149 = vpop.xlane.xlu0 %1148
        %1150 = vadd.xlane.f32.xlu0 %v1114
        %v1151 = vpop.xlane.xlu0 %1150
        %1152 = vadd.xlane.f32.xlu0 %v1115
        %v1153 = vpop.xlane.xlu0 %1152
        %1154 = vadd.xlane.f32.xlu0 %v1116
        %v1155 = vpop.xlane.xlu0 %1154
        %1156 = vadd.xlane.f32.xlu0 %v1117
        %v1157 = vpop.xlane.xlu0 %1156
        %1158 = vadd.xlane.f32.xlu0 %v1118
        %v1159 = vpop.xlane.xlu0 %1158
        %1160 = vadd.xlane.f32.xlu0 %v1119
        %v1161 = vpop.xlane.xlu0 %1160
        %1162 = vadd.xlane.f32.xlu0 %v1120
        %v1163 = vpop.xlane.xlu0 %1162
        %1164 = vadd.xlane.f32.xlu0 %v1121
        %v1165 = vpop.xlane.xlu0 %1164
        %1166 = vadd.xlane.f32.xlu0 %v1122
        %v1167 = vpop.xlane.xlu0 %1166
        %1168 = vadd.xlane.f32.xlu0 %v1123
        %v1169 = vpop.xlane.xlu0 %1168
        %1170 = vadd.xlane.f32.xlu0 %v1124
        %v1171 = vpop.xlane.xlu0 %1170
        %1172 = vadd.xlane.f32.xlu0 %v1125
        %v1173 = vpop.xlane.xlu0 %1172
        %1174 = vadd.xlane.f32.xlu0 %v1126
        %v1175 = vpop.xlane.xlu0 %1174
        %1176 = vadd.xlane.f32.xlu0 %v1127
        %v1177 = vpop.xlane.xlu0 %1176
        %1178 = vadd.xlane.f32.xlu0 %v1128
        %v1179 = vpop.xlane.xlu0 %1178
        %1180 = vadd.xlane.f32.xlu0 %v1129
        %v1181 = vpop.xlane.xlu0 %1180
        %1182 = vadd.xlane.f32.xlu0 %v1130
        %v1183 = vpop.xlane.xlu0 %1182
        %1184 = vadd.xlane.f32.xlu0 %v1131
        %v1185 = vpop.xlane.xlu0 %1184
        %1186 = vadd.xlane.f32.xlu0 %v1132
        %v1187 = vpop.xlane.xlu0 %1186
        %1188 = vadd.xlane.f32.xlu0 %v1133
        %v1189 = vpop.xlane.xlu0 %1188
        %1190 = vadd.xlane.f32.xlu0 %v1134
        %v1191 = vpop.xlane.xlu0 %1190
        %1192 = vadd.xlane.f32.xlu0 %v1135
        %v1193 = vpop.xlane.xlu0 %1192
        %1194 = vadd.xlane.f32.xlu0 %v1136
        %v1195 = vpop.xlane.xlu0 %1194
        %1196 = vadd.xlane.f32.xlu0 %v1137
        %v1197 = vpop.xlane.xlu0 %1196
        %1198 = vadd.xlane.f32.xlu0 %v1138
        %v1199 = vpop.xlane.xlu0 %1198
        %1200 = vadd.xlane.f32.xlu0 %v1139
        %v1201 = vpop.xlane.xlu0 %1200
        %1202 = vadd.xlane.f32.xlu0 %v1140
        %v1203 = vpop.xlane.xlu0 %1202
        %1204 = vadd.xlane.f32.xlu0 %v1141
        %v1205 = vpop.xlane.xlu0 %1204
        %v1238 = vlaneseq
        %v1239 = vand.u32 %v1238, 127
        %v1240 = vperm.slane %v1143, %v1239
        %v1241 = vperm.slane %v1145, %v1239
        %v1242 = vperm.slane %v1147, %v1239
        %v1243 = vperm.slane %v1149, %v1239
        %v1244 = vperm.slane %v1151, %v1239
        %v1245 = vperm.slane %v1153, %v1239
        %v1246 = vperm.slane %v1155, %v1239
        %v1247 = vperm.slane %v1157, %v1239
        %v1248 = vperm.slane %v1159, %v1239
        %v1249 = vperm.slane %v1161, %v1239
        %v1250 = vperm.slane %v1163, %v1239
        %v1251 = vperm.slane %v1165, %v1239
        %v1252 = vperm.slane %v1167, %v1239
        %v1253 = vperm.slane %v1169, %v1239
        %v1254 = vperm.slane %v1171, %v1239
        %v1255 = vperm.slane %v1173, %v1239
        %v1256 = vperm.slane %v1175, %v1239
        %v1257 = vperm.slane %v1177, %v1239
        %v1258 = vperm.slane %v1179, %v1239
        %v1259 = vperm.slane %v1181, %v1239
        %v1260 = vperm.slane %v1183, %v1239
        %v1261 = vperm.slane %v1185, %v1239
        %v1262 = vperm.slane %v1187, %v1239
        %v1263 = vperm.slane %v1189, %v1239
        %v1264 = vperm.slane %v1191, %v1239
        %v1265 = vperm.slane %v1193, %v1239
        %v1266 = vperm.slane %v1195, %v1239
        %v1267 = vperm.slane %v1197, %v1239
        %v1268 = vperm.slane %v1199, %v1239
        %v1269 = vperm.slane %v1201, %v1239
        %v1270 = vperm.slane %v1203, %v1239
        %v1271 = vperm.slane %v1205, %v1239
        %v1272 = vsel %vm791, %v1241, %v1240
        %v1273 = vsel %vm793, %v1242, %v1272
        %v1274 = vsel %vm795, %v1243, %v1273
        %v1275 = vsel %vm797, %v1244, %v1274
        %v1276 = vsel %vm799, %v1245, %v1275
        %v1277 = vsel %vm801, %v1246, %v1276
        %v1278 = vsel %vm803, %v1247, %v1277
        %v1279 = vsel %vm791, %v1249, %v1248
        %v1280 = vsel %vm793, %v1250, %v1279
        %v1281 = vsel %vm795, %v1251, %v1280
        %v1282 = vsel %vm797, %v1252, %v1281
        %v1283 = vsel %vm799, %v1253, %v1282
        %v1284 = vsel %vm801, %v1254, %v1283
        %v1285 = vsel %vm803, %v1255, %v1284
        %v1286 = vsel %vm791, %v1257, %v1256
        %v1287 = vsel %vm793, %v1258, %v1286
        %v1288 = vsel %vm795, %v1259, %v1287
        %v1289 = vsel %vm797, %v1260, %v1288
        %v1290 = vsel %vm799, %v1261, %v1289
        %v1291 = vsel %vm801, %v1262, %v1290
        %v1292 = vsel %vm803, %v1263, %v1291
        %v1293 = vsel %vm791, %v1265, %v1264
        %v1294 = vsel %vm793, %v1266, %v1293
        %v1295 = vsel %vm795, %v1267, %v1294
        %v1296 = vsel %vm797, %v1268, %v1295
        %v1297 = vsel %vm799, %v1269, %v1296
        %v1298 = vsel %vm801, %v1270, %v1297
        %v1299 = vsel %vm803, %v1271, %v1298
        %vm1304 = vcmask 64512
        %v1305 = vsel %vm1304, %v1278, -inf
        %1306 = vmax.xlane.f32.xlu0 %v1305
        %v1307 = vpop.xlane.xlu0 %1306
        %v1308 = vsel %vm1304, %v1285, -inf
        %1309 = vmax.xlane.f32.xlu0 %v1308
        %v1310 = vpop.xlane.xlu0 %1309
        %v1311 = vsel %vm1304, %v1292, -inf
        %1312 = vmax.xlane.f32.xlu0 %v1311
        %v1313 = vpop.xlane.xlu0 %1312
        %v1314 = vsel %vm1304, %v1299, -inf
        %1315 = vmax.xlane.f32.xlu0 %v1314
        %v1316 = vpop.xlane.xlu0 %1315
        %v1321 = vperm.slane %v1307, 0
        %v1322 = vperm.slane %v1307, 1
        %v1323 = vperm.slane %v1307, 2
        %v1324 = vperm.slane %v1307, 3
        %v1325 = vperm.slane %v1307, 4
        %v1326 = vperm.slane %v1307, 5
        %v1327 = vperm.slane %v1307, 6
        %v1328 = vperm.slane %v1307, 7
        %v1329 = vperm.slane %v1310, 0
        %v1330 = vperm.slane %v1310, 1
        %v1331 = vperm.slane %v1310, 2
        %v1332 = vperm.slane %v1310, 3
        %v1333 = vperm.slane %v1310, 4
        %v1334 = vperm.slane %v1310, 5
        %v1335 = vperm.slane %v1310, 6
        %v1336 = vperm.slane %v1310, 7
        %v1337 = vperm.slane %v1313, 0
        %v1338 = vperm.slane %v1313, 1
        %v1339 = vperm.slane %v1313, 2
        %v1340 = vperm.slane %v1313, 3
        %v1341 = vperm.slane %v1313, 4
        %v1342 = vperm.slane %v1313, 5
        %v1343 = vperm.slane %v1313, 6
        %v1344 = vperm.slane %v1313, 7
        %v1345 = vperm.slane %v1316, 0
        %v1346 = vperm.slane %v1316, 1
        %v1347 = vperm.slane %v1316, 2
        %v1348 = vperm.slane %v1316, 3
        %v1349 = vperm.slane %v1316, 4
        %v1350 = vperm.slane %v1316, 5
        %v1351 = vperm.slane %v1316, 6
        %v1352 = vperm.slane %v1316, 7
        %v1385 = vsub.f32 %v1143, %v1321
        %v1386 = vsub.f32 %v1145, %v1322
        %v1387 = vsub.f32 %v1147, %v1323
        %v1388 = vsub.f32 %v1149, %v1324
        %v1389 = vsub.f32 %v1151, %v1325
        %v1390 = vsub.f32 %v1153, %v1326
        %v1391 = vsub.f32 %v1155, %v1327
        %v1392 = vsub.f32 %v1157, %v1328
        %v1393 = vsub.f32 %v1159, %v1329
        %v1394 = vsub.f32 %v1161, %v1330
        %v1395 = vsub.f32 %v1163, %v1331
        %v1396 = vsub.f32 %v1165, %v1332
        %v1397 = vsub.f32 %v1167, %v1333
        %v1398 = vsub.f32 %v1169, %v1334
        %v1399 = vsub.f32 %v1171, %v1335
        %v1400 = vsub.f32 %v1173, %v1336
        %v1401 = vsub.f32 %v1175, %v1337
        %v1402 = vsub.f32 %v1177, %v1338
        %v1403 = vsub.f32 %v1179, %v1339
        %v1404 = vsub.f32 %v1181, %v1340
        %v1405 = vsub.f32 %v1183, %v1341
        %v1406 = vsub.f32 %v1185, %v1342
        %v1407 = vsub.f32 %v1187, %v1343
        %v1408 = vsub.f32 %v1189, %v1344
        %v1409 = vsub.f32 %v1191, %v1345
        %v1410 = vsub.f32 %v1193, %v1346
        %v1411 = vsub.f32 %v1195, %v1347
        %v1412 = vsub.f32 %v1197, %v1348
        %v1413 = vsub.f32 %v1199, %v1349
        %v1414 = vsub.f32 %v1201, %v1350
        %v1415 = vsub.f32 %v1203, %v1351
        %v1416 = vsub.f32 %v1205, %v1352
        %v1417 = vmul.f32 %v1385, 1.442695
        %v1418 = vpow.pop %v1417
        %v1419 = vmul.f32 %v1386, 1.442695
        %v1420 = vpow.pop %v1419
        %v1421 = vmul.f32 %v1387, 1.442695
        %v1422 = vpow.pop %v1421
        %v1423 = vmul.f32 %v1388, 1.442695
        %v1424 = vpow.pop %v1423
        %v1425 = vmul.f32 %v1389, 1.442695
        %v1426 = vpow.pop %v1425
        %v1427 = vmul.f32 %v1390, 1.442695
        %v1428 = vpow.pop %v1427
        %v1429 = vmul.f32 %v1391, 1.442695
        %v1430 = vpow.pop %v1429
        %v1431 = vmul.f32 %v1392, 1.442695
        %v1432 = vpow.pop %v1431
        %v1433 = vmul.f32 %v1393, 1.442695
        %v1434 = vpow.pop %v1433
        %v1435 = vmul.f32 %v1394, 1.442695
        %v1436 = vpow.pop %v1435
        %v1437 = vmul.f32 %v1395, 1.442695
        %v1438 = vpow.pop %v1437
        %v1439 = vmul.f32 %v1396, 1.442695
        %v1440 = vpow.pop %v1439
        %v1441 = vmul.f32 %v1397, 1.442695
        %v1442 = vpow.pop %v1441
        %v1443 = vmul.f32 %v1398, 1.442695
        %v1444 = vpow.pop %v1443
        %v1445 = vmul.f32 %v1399, 1.442695
        %v1446 = vpow.pop %v1445
        %v1447 = vmul.f32 %v1400, 1.442695
        %v1448 = vpow.pop %v1447
        %v1449 = vmul.f32 %v1401, 1.442695
        %v1450 = vpow.pop %v1449
        %v1451 = vmul.f32 %v1402, 1.442695
        %v1452 = vpow.pop %v1451
        %v1453 = vmul.f32 %v1403, 1.442695
        %v1454 = vpow.pop %v1453
        %v1455 = vmul.f32 %v1404, 1.442695
        %v1456 = vpow.pop %v1455
        %v1457 = vmul.f32 %v1405, 1.442695
        %v1458 = vpow.pop %v1457
        %v1459 = vmul.f32 %v1406, 1.442695
        %v1460 = vpow.pop %v1459
        %v1461 = vmul.f32 %v1407, 1.442695
        %v1462 = vpow.pop %v1461
        %v1463 = vmul.f32 %v1408, 1.442695
        %v1464 = vpow.pop %v1463
        %v1465 = vmul.f32 %v1409, 1.442695
        %v1466 = vpow.pop %v1465
        %v1467 = vmul.f32 %v1410, 1.442695
        %v1468 = vpow.pop %v1467
        %v1469 = vmul.f32 %v1411, 1.442695
        %v1470 = vpow.pop %v1469
        %v1471 = vmul.f32 %v1412, 1.442695
        %v1472 = vpow.pop %v1471
        %v1473 = vmul.f32 %v1413, 1.442695
        %v1474 = vpow.pop %v1473
        %v1475 = vmul.f32 %v1414, 1.442695
        %v1476 = vpow.pop %v1475
        %v1477 = vmul.f32 %v1415, 1.442695
        %v1478 = vpow.pop %v1477
        %v1479 = vmul.f32 %v1416, 1.442695
        %v1480 = vpow.pop %v1479
        %1513 = vset.pattern.permute.xlu0 0
        %1514 = vperm.xlu0 %1513, %v1418
        %v1515 = vpop.permute.xlu0 %1514
        %1516 = vset.pattern.permute.xlu0 0
        %1517 = vperm.xlu0 %1516, %v1420
        %v1518 = vpop.permute.xlu0 %1517
        %1519 = vset.pattern.permute.xlu0 0
        %1520 = vperm.xlu0 %1519, %v1422
        %v1521 = vpop.permute.xlu0 %1520
        %1522 = vset.pattern.permute.xlu0 0
        %1523 = vperm.xlu0 %1522, %v1424
        %v1524 = vpop.permute.xlu0 %1523
        %1525 = vset.pattern.permute.xlu0 0
        %1526 = vperm.xlu0 %1525, %v1426
        %v1527 = vpop.permute.xlu0 %1526
        %1528 = vset.pattern.permute.xlu0 0
        %1529 = vperm.xlu0 %1528, %v1428
        %v1530 = vpop.permute.xlu0 %1529
        %1531 = vset.pattern.permute.xlu0 0
        %1532 = vperm.xlu0 %1531, %v1430
        %v1533 = vpop.permute.xlu0 %1532
        %1534 = vset.pattern.permute.xlu0 0
        %1535 = vperm.xlu0 %1534, %v1432
        %v1536 = vpop.permute.xlu0 %1535
        %1537 = vset.pattern.permute.xlu0 0
        %1538 = vperm.xlu0 %1537, %v1434
        %v1539 = vpop.permute.xlu0 %1538
        %1540 = vset.pattern.permute.xlu0 0
        %1541 = vperm.xlu0 %1540, %v1436
        %v1542 = vpop.permute.xlu0 %1541
        %1543 = vset.pattern.permute.xlu0 0
        %1544 = vperm.xlu0 %1543, %v1438
        %v1545 = vpop.permute.xlu0 %1544
        %1546 = vset.pattern.permute.xlu0 0
        %1547 = vperm.xlu0 %1546, %v1440
        %v1548 = vpop.permute.xlu0 %1547
        %1549 = vset.pattern.permute.xlu0 0
        %1550 = vperm.xlu0 %1549, %v1442
        %v1551 = vpop.permute.xlu0 %1550
        %1552 = vset.pattern.permute.xlu0 0
        %1553 = vperm.xlu0 %1552, %v1444
        %v1554 = vpop.permute.xlu0 %1553
        %1555 = vset.pattern.permute.xlu0 0
        %1556 = vperm.xlu0 %1555, %v1446
        %v1557 = vpop.permute.xlu0 %1556
        %1558 = vset.pattern.permute.xlu0 0
        %1559 = vperm.xlu0 %1558, %v1448
        %v1560 = vpop.permute.xlu0 %1559
        %1561 = vset.pattern.permute.xlu0 0
        %1562 = vperm.xlu0 %1561, %v1450
        %v1563 = vpop.permute.xlu0 %1562
        %1564 = vset.pattern.permute.xlu0 0
        %1565 = vperm.xlu0 %1564, %v1452
        %v1566 = vpop.permute.xlu0 %1565
        %1567 = vset.pattern.permute.xlu0 0
        %1568 = vperm.xlu0 %1567, %v1454
        %v1569 = vpop.permute.xlu0 %1568
        %1570 = vset.pattern.permute.xlu0 0
        %1571 = vperm.xlu0 %1570, %v1456
        %v1572 = vpop.permute.xlu0 %1571
        %1573 = vset.pattern.permute.xlu0 0
        %1574 = vperm.xlu0 %1573, %v1458
        %v1575 = vpop.permute.xlu0 %1574
        %1576 = vset.pattern.permute.xlu0 0
        %1577 = vperm.xlu0 %1576, %v1460
        %v1578 = vpop.permute.xlu0 %1577
        %1579 = vset.pattern.permute.xlu0 0
        %1580 = vperm.xlu0 %1579, %v1462
        %v1581 = vpop.permute.xlu0 %1580
        %1582 = vset.pattern.permute.xlu0 0
        %1583 = vperm.xlu0 %1582, %v1464
        %v1584 = vpop.permute.xlu0 %1583
        %1585 = vset.pattern.permute.xlu0 0
        %1586 = vperm.xlu0 %1585, %v1466
        %v1587 = vpop.permute.xlu0 %1586
        %1588 = vset.pattern.permute.xlu0 0
        %1589 = vperm.xlu0 %1588, %v1468
        %v1590 = vpop.permute.xlu0 %1589
        %1591 = vset.pattern.permute.xlu0 0
        %1592 = vperm.xlu0 %1591, %v1470
        %v1593 = vpop.permute.xlu0 %1592
        %1594 = vset.pattern.permute.xlu0 0
        %1595 = vperm.xlu0 %1594, %v1472
        %v1596 = vpop.permute.xlu0 %1595
        %1597 = vset.pattern.permute.xlu0 0
        %1598 = vperm.xlu0 %1597, %v1474
        %v1599 = vpop.permute.xlu0 %1598
        %1600 = vset.pattern.permute.xlu0 0
        %1601 = vperm.xlu0 %1600, %v1476
        %v1602 = vpop.permute.xlu0 %1601
        %1603 = vset.pattern.permute.xlu0 0
        %1604 = vperm.xlu0 %1603, %v1478
        %v1605 = vpop.permute.xlu0 %1604
        %1606 = vset.pattern.permute.xlu0 0
        %1607 = vperm.xlu0 %1606, %v1480
        %v1608 = vpop.permute.xlu0 %1607
        %v1609 = vperm.slane %v1515, %v1239
        %v1610 = vperm.slane %v1518, %v1239
        %v1611 = vperm.slane %v1521, %v1239
        %v1612 = vperm.slane %v1524, %v1239
        %v1613 = vperm.slane %v1527, %v1239
        %v1614 = vperm.slane %v1530, %v1239
        %v1615 = vperm.slane %v1533, %v1239
        %v1616 = vperm.slane %v1536, %v1239
        %v1617 = vperm.slane %v1539, %v1239
        %v1618 = vperm.slane %v1542, %v1239
        %v1619 = vperm.slane %v1545, %v1239
        %v1620 = vperm.slane %v1548, %v1239
        %v1621 = vperm.slane %v1551, %v1239
        %v1622 = vperm.slane %v1554, %v1239
        %v1623 = vperm.slane %v1557, %v1239
        %v1624 = vperm.slane %v1560, %v1239
        %v1625 = vperm.slane %v1563, %v1239
        %v1626 = vperm.slane %v1566, %v1239
        %v1627 = vperm.slane %v1569, %v1239
        %v1628 = vperm.slane %v1572, %v1239
        %v1629 = vperm.slane %v1575, %v1239
        %v1630 = vperm.slane %v1578, %v1239
        %v1631 = vperm.slane %v1581, %v1239
        %v1632 = vperm.slane %v1584, %v1239
        %v1633 = vperm.slane %v1587, %v1239
        %v1634 = vperm.slane %v1590, %v1239
        %v1635 = vperm.slane %v1593, %v1239
        %v1636 = vperm.slane %v1596, %v1239
        %v1637 = vperm.slane %v1599, %v1239
        %v1638 = vperm.slane %v1602, %v1239
        %v1639 = vperm.slane %v1605, %v1239
        %v1640 = vperm.slane %v1608, %v1239
        %v1641 = vsel %vm791, %v1610, %v1609
        %v1642 = vsel %vm793, %v1611, %v1641
        %v1643 = vsel %vm795, %v1612, %v1642
        %v1644 = vsel %vm797, %v1613, %v1643
        %v1645 = vsel %vm799, %v1614, %v1644
        %v1646 = vsel %vm801, %v1615, %v1645
        %v1647 = vsel %vm803, %v1616, %v1646
        %v1648 = vsel %vm791, %v1618, %v1617
        %v1649 = vsel %vm793, %v1619, %v1648
        %v1650 = vsel %vm795, %v1620, %v1649
        %v1651 = vsel %vm797, %v1621, %v1650
        %v1652 = vsel %vm799, %v1622, %v1651
        %v1653 = vsel %vm801, %v1623, %v1652
        %v1654 = vsel %vm803, %v1624, %v1653
        %v1655 = vsel %vm791, %v1626, %v1625
        %v1656 = vsel %vm793, %v1627, %v1655
        %v1657 = vsel %vm795, %v1628, %v1656
        %v1658 = vsel %vm797, %v1629, %v1657
        %v1659 = vsel %vm799, %v1630, %v1658
        %v1660 = vsel %vm801, %v1631, %v1659
        %v1661 = vsel %vm803, %v1632, %v1660
        %v1662 = vsel %vm791, %v1634, %v1633
        %v1663 = vsel %vm793, %v1635, %v1662
        %v1664 = vsel %vm795, %v1636, %v1663
        %v1665 = vsel %vm797, %v1637, %v1664
        %v1666 = vsel %vm799, %v1638, %v1665
        %v1667 = vsel %vm801, %v1639, %v1666
        %v1668 = vsel %vm803, %v1640, %v1667
        %v1673 = vsel %vm1304, %v1647, 0.0
        %1674 = vadd.xlane.f32.xlu0 %v1673
        %v1675 = vpop.xlane.xlu0 %1674
        %v1676 = vsel %vm1304, %v1654, 0.0
        %1677 = vadd.xlane.f32.xlu0 %v1676
        %v1678 = vpop.xlane.xlu0 %1677
        %v1679 = vsel %vm1304, %v1661, 0.0
        %1680 = vadd.xlane.f32.xlu0 %v1679
        %v1681 = vpop.xlane.xlu0 %1680
        %v1682 = vsel %vm1304, %v1668, 0.0
        %1683 = vadd.xlane.f32.xlu0 %v1682
        %v1684 = vpop.xlane.xlu0 %1683
        %v1685 = vlog2.pop %v1675
        %v1686 = vmul.f32 %v1685, 0.6931472
        %v1687 = vlog2.pop %v1678
        %v1688 = vmul.f32 %v1687, 0.6931472
        %v1689 = vlog2.pop %v1681
        %v1690 = vmul.f32 %v1689, 0.6931472
        %v1691 = vlog2.pop %v1684
        %v1692 = vmul.f32 %v1691, 0.6931472
        %v1693 = vadd.f32 %v1307, %v1686
        %v1694 = vadd.f32 %v1310, %v1688
        %v1695 = vadd.f32 %v1313, %v1690
        %v1696 = vadd.f32 %v1316, %v1692
        %v1697 = vrot.slane %v1145, 7
        %v1698 = vsel %vm791, %v1697, %v1143
        %v1699 = vrot.slane %v1147, 6
        %v1700 = vsel %vm793, %v1699, %v1698
        %v1701 = vrot.slane %v1149, 5
        %v1702 = vsel %vm795, %v1701, %v1700
        %v1703 = vrot.slane %v1151, 4
        %v1704 = vsel %vm797, %v1703, %v1702
        %v1705 = vrot.slane %v1153, 3
        %v1706 = vsel %vm799, %v1705, %v1704
        %v1707 = vrot.slane %v1155, 2
        %v1708 = vsel %vm801, %v1707, %v1706
        %v1709 = vrot.slane %v1157, 1
        %v1710 = vsel %vm803, %v1709, %v1708
        %v1711 = vrot.slane %v1161, 7
        %v1712 = vsel %vm791, %v1711, %v1159
        %v1713 = vrot.slane %v1163, 6
        %v1714 = vsel %vm793, %v1713, %v1712
        %v1715 = vrot.slane %v1165, 5
        %v1716 = vsel %vm795, %v1715, %v1714
        %v1717 = vrot.slane %v1167, 4
        %v1718 = vsel %vm797, %v1717, %v1716
        %v1719 = vrot.slane %v1169, 3
        %v1720 = vsel %vm799, %v1719, %v1718
        %v1721 = vrot.slane %v1171, 2
        %v1722 = vsel %vm801, %v1721, %v1720
        %v1723 = vrot.slane %v1173, 1
        %v1724 = vsel %vm803, %v1723, %v1722
        %v1725 = vrot.slane %v1177, 7
        %v1726 = vsel %vm791, %v1725, %v1175
        %v1727 = vrot.slane %v1179, 6
        %v1728 = vsel %vm793, %v1727, %v1726
        %v1729 = vrot.slane %v1181, 5
        %v1730 = vsel %vm795, %v1729, %v1728
        %v1731 = vrot.slane %v1183, 4
        %v1732 = vsel %vm797, %v1731, %v1730
        %v1733 = vrot.slane %v1185, 3
        %v1734 = vsel %vm799, %v1733, %v1732
        %v1735 = vrot.slane %v1187, 2
        %v1736 = vsel %vm801, %v1735, %v1734
        %v1737 = vrot.slane %v1189, 1
        %v1738 = vsel %vm803, %v1737, %v1736
        %v1739 = vrot.slane %v1193, 7
        %v1740 = vsel %vm791, %v1739, %v1191
        %v1741 = vrot.slane %v1195, 6
        %v1742 = vsel %vm793, %v1741, %v1740
        %v1743 = vrot.slane %v1197, 5
        %v1744 = vsel %vm795, %v1743, %v1742
        %v1745 = vrot.slane %v1199, 4
        %v1746 = vsel %vm797, %v1745, %v1744
        %v1747 = vrot.slane %v1201, 3
        %v1748 = vsel %vm799, %v1747, %v1746
        %v1749 = vrot.slane %v1203, 2
        %v1750 = vsel %vm801, %v1749, %v1748
        %v1751 = vrot.slane %v1205, 1
        %v1752 = vsel %vm803, %v1751, %v1750
        %v1757 = vsub.f32 %v1693, %v1710
        %v1758 = vsub.f32 %v1694, %v1724
        %v1759 = vsub.f32 %v1695, %v1738
        %v1760 = vsub.f32 %v1696, %v1752
        %vm1761 = vcmask 7168
        %v1762 = vsel %vm1761, %v1757, 0.0
        %v1763 = vsel %vm1761, %v1758, 0.0
        %v1764 = vadd.f32 %v1762, %v1763
        %v1765 = vsel %vm1761, %v1759, 0.0
        %v1766 = vadd.f32 %v1764, %v1765
        %v1767 = vsel %vm1761, %v1760, 0.0
        %v1768 = vadd.f32 %v1766, %v1767
        %v1769 = vrot.slane %v1768, 4
        %v1770 = vadd.f32 %v1768, %v1769
        %v1771 = vrot.slane %v1770, 2
        %v1772 = vadd.f32 %v1770, %v1771
        %v1773 = vrot.slane %v1772, 1
        %v1774 = vadd.f32 %v1772, %v1773
        %1776 = vset.pattern.permute.xlu0 0
        %1777 = vperm.xlu0 %1776, %v1774
        %v1778 = vpop.permute.xlu0 %1777
        %1780 = vst [vmem:[%s292] sm:$0x1] %v1778
        %s1781 = sand.u32 %s127, 1
        %s1782 = scalar_lea.sflag [#allocation4], %s1781
        %s1783 = sand.u32 %s127, 1
        %s1784 = scalar_lea.vmem [#allocation10], %s1783
        // Predicated region
        $region53: #{tpu_custom_call.1} parent=35 // pred_check
          %p1785 = pneg %p137
        $region54: #{tpu_custom_call.1} parent=35 // pred_check_branch
          %1787 = sbr.rel (%p1785) target = $region56
        $region55: #{tpu_custom_call.1} parent=35 // pred_region
          %1789 = vsyncadd %s1782, 0
          %s1790 = scalar_lea.hbm %s4, %s25
          %s1792 = sshll.u32 %s1784, 4
          %s1793 = int_to_ptr.vmem [resolvable:$true] %s1792
          %s1794 = sshll.u32 %s1790, 4
          %s1795 = int_to_ptr.hbm [resolvable:$true] %s1794
          %1797 = dma.vmem_to_hbm [thread:$0]  %s1793, 16, %s1795, %s1782
        $region56: #{tpu_custom_call.1} parent=35 // pred_fallthru
          _
      $region36: #{tpu_custom_call.1} parent=5 // pred_fallthru
        _
      %p1798 = scmp.le.s32.totalorder 2, %s20
      // Predicated region
      $region57: #{tpu_custom_call.1} parent=5 // pred_check
        %p1799 = pneg %p1798
      $region58: #{tpu_custom_call.1} parent=5 // pred_check_branch
        %1801 = sbr.rel (%p1799) target = $region60
      $region59: #{tpu_custom_call.1} parent=5 // pred_region
        %s1802 = ssub.s32 %s20, 2
        // Predicated region
        $region61: #{tpu_custom_call.1} parent=59 // pred_check
          %p1803 = pneg %p143
        $region62: #{tpu_custom_call.1} parent=59 // pred_check_branch
          %1805 = sbr.rel (%p1803) target = $region64
        $region63: #{tpu_custom_call.1} parent=59 // pred_region
          %s1806 = sand.u32 %s128, 1
          %s1807 = scalar_lea.sflag [#allocation4], %s1806
          %s1808 = sand.u32 %s128, 1
          %s1809 = scalar_lea.vmem [#allocation10], %s1808
          %1811 = dma.done %s1807, 16
        $region64: #{tpu_custom_call.1} parent=59 // pred_fallthru
          _
      $region60: #{tpu_custom_call.1} parent=5 // pred_fallthru
        _
    $region6: #{tpu_custom_call.1} parent=1 // loop_footer
      %s24 = sadd.s32 1, %s20
    $region7: #{tpu_custom_call.1} parent=1 // loop_footer_branch
      %19 = sbr.rel target = $region3
    $region8: #{tpu_custom_call.1} parent=1 // loop_exit
      _
    %1812 = vsyncpa [#allocation3], 1
    %s1813 = scalar_lea.sflag [#allocation3], 1
    %1814 = vsyncpa %s1813, 1
    %1815 = vsyncpa [#allocation6], 1
    %s1816 = scalar_lea.sflag [#allocation6], 1
    %1817 = vsyncpa %s1816, 1
    %1818 = vsyncpa [#allocation9], 1
    %1819 = vsyncpa [#allocation4], 1
    %s1820 = scalar_lea.sflag [#allocation4], 1
    %1821 = vsyncpa %s1820, 1

</llo_original>
